<compile_context>
chip_gen: v7x
topology: tpu7x:2x2x1
jax: 0.10.0
libtpu: 0.0.40
codegen_flags: <defaults>
</compile_context>

<pallas_src>
import math
import functools

import jax
import jax.numpy as jnp
from jax import lax
from jax.experimental import pallas as pl
from jax.experimental.pallas import tpu as pltpu


def _encoder_kernel(x_ref, sew_ref, w_in_ref, w_out_ref, w1_ref, w2_ref,
                    bias_ref, o_ref, *, num_heads):
    bb, S, E = x_ref.shape
    H = num_heads
    Dh = E // H
    R = bb * S                        # batch folded into M for the dense matmuls
    BH = bb * H                       # attention batch (per batch-elem, per head)
    F1 = w1_ref.shape[1]              # FFN hidden width
    eps = 1e-5
    inv_n = 1.0 / float(S * E)
    cd = w_in_ref.dtype               # matmul operand dtype (f32 or bf16)

    pe = sew_ref[0]                   # (S, E)
    ln_w = sew_ref[1]                 # (S, E)
    ln_b = sew_ref[2]                 # (S, E)

    b_in = bias_ref[0:1, 0:3 * E]     # (1, 3E)  (q-scale already folded in)
    b_out = bias_ref[1:2, 0:E]        # (1, E)
    b_fc1 = bias_ref[2:3, 0:F1]       # (1, F1)
    b_fc2 = bias_ref[3:4, 0:E]        # (1, E)

    # ---- position encoding; fold batch into rows (free leading-dim merge) ----
    x3 = x_ref[...].astype(jnp.float32) + pe[None, :, :]              # (bb, S, E)
    x2 = x3.reshape(R, E)                                             # (R, E)

    # ---- fused QKV projection: one (R,E)@(E,3E) matmul (weight pre-transposed,
    #      1/sqrt(Dh) pre-folded into the Q columns host-side) ----
    qkv = jnp.dot(x2.astype(cd), w_in_ref[...],
                  preferred_element_type=jnp.float32) + b_in          # (R, 3E)

    # ---- split heads: a single relayout covers q, k and v ----
    # 3E axis order is [q heads | k heads | v heads], each head Dh-contiguous.
    qkv4 = qkv.reshape(bb, S, 3 * H, Dh).transpose(0, 2, 1, 3)        # (bb, 3H, S, Dh)
    qh = qkv4[:, 0:H].reshape(BH, S, Dh)                              # (BH, S, Dh)
    kh = qkv4[:, H:2 * H].reshape(BH, S, Dh)                          # (BH, S, Dh)
    vh = qkv4[:, 2 * H:3 * H].reshape(BH, S, Dh)                      # (BH, S, Dh)

    # ---- attention, batched over (batch * head): no cross-batch mask needed ----
    s = jnp.einsum('bqd,bkd->bqk', qh.astype(cd), kh.astype(cd),
                   preferred_element_type=jnp.float32)                # (BH, S, S)
    m = jnp.max(s, axis=-1, keepdims=True)
    p = jnp.exp(s - m)
    p = p * pl.reciprocal(jnp.sum(p, axis=-1, keepdims=True), approx=True)
    o = jnp.einsum('bqk,bkd->bqd', p.astype(cd), vh.astype(cd),
                   preferred_element_type=jnp.float32)                # (BH, S, Dh)

    # ---- merge heads + output projection (weight pre-transposed) ----
    attn = o.reshape(bb, H, S, Dh).transpose(0, 2, 1, 3).reshape(R, E)
    attn = jnp.dot(attn.astype(cd), w_out_ref[...],
                   preferred_element_type=jnp.float32) + b_out        # (R, E)

    # ---- Add & joint-[S,E] LayerNorm (shared affine params), one-pass stats ----
    def add_norm(res, sub):
        y3 = (res + sub).reshape(bb, S, E)
        mu = jnp.sum(y3, axis=(1, 2), keepdims=True) * inv_n
        ms = jnp.sum(y3 * y3, axis=(1, 2), keepdims=True) * inv_n
        var = jnp.maximum(ms - mu * mu, 0.0)
        y3 = (y3 - mu) * lax.rsqrt(var + eps) * ln_w[None] + ln_b[None]
        return y3.reshape(R, E)

    y2 = add_norm(x2, attn)

    # ---- feed-forward (weights pre-transposed host-side) ----
    h1 = jnp.dot(y2.astype(cd), w1_ref[...],
                 preferred_element_type=jnp.float32) + b_fc1          # (R, F1)
    h1 = jnp.where(h1 > 0, h1, 0.01 * h1)                             # leaky_relu
    ff = jnp.dot(h1.astype(cd), w2_ref[...],
                 preferred_element_type=jnp.float32) + b_fc2          # (R, E)

    z2 = add_norm(y2, ff)
    o_ref[...] = z2.reshape(bb, S, E).astype(o_ref.dtype)


def _default_batch_block(B):
    # Largest divisor of B giving >= 2 grid steps (pipelining + v7x megacore).
    for cand in range(max(B // 2, 1), 0, -1):
        if B % cand == 0:
            return cand
    return 1


def _vmem_bytes_estimate(bb, S, E, F1, H, bw, w_bytes):
    f32 = 4
    R, BH = bb * S, bb * H
    blocks = 2 * 2 * bb * S * E * f32                         # dbl-buffered x in + out
    weights = 2 * (E * 3 * E + E * E + E * F1 + F1 * E) * w_bytes
    tables = 2 * (3 * S * E + 4 * bw) * f32
    live = (R * 3 * E + 2 * BH * S * S + R * F1 + 6 * R * E) * f32
    return blocks + weights + tables + live


def encoder_forward(x, params, num_heads, *, batch_block=None,
                    compute_dtype=jnp.float32):
    """x: (B, S, E) float32.  params: PyTorch-layout arrays.  Returns (B, S, E).

    compute_dtype=jnp.bfloat16 uses the native bf16 MXU fast path on v5e/v6e/v7x
    (f32 accumulation; softmax/LayerNorm stay f32).  The self-test below sticks
    to f32 because the CPU interpret backend cannot execute bf16 matmuls.
    """
    B, S, E = x.shape
    bb = _default_batch_block(B) if batch_block is None else batch_block
    if B % bb != 0:
        raise ValueError("batch_block must divide the batch size")
    nb = B // bb
    hidden = params["fc1_w"].shape[0]

    # Pack PE + LayerNorm affine params into one (3, S, E) table.
    sew = jnp.stack([params["pe"], params["ln_w"], params["ln_b"]]).astype(jnp.float32)

    # Pre-transpose weights host-side; fold the 1/sqrt(Dh) q-scale into the Q
    # rows of the fused in-projection weight/bias (so the kernel never scales q).
    scale = 1.0 / math.sqrt(E // num_heads)
    qkv_scale = jnp.concatenate([jnp.full((E,), scale, jnp.float32),
                                 jnp.ones((2 * E,), jnp.float32)])
    w_in_t = (params["in_w"] * qkv_scale[:, None]).T.astype(compute_dtype)  # (E, 3E)
    w_out_t = params["out_w"].T.astype(compute_dtype)                       # (E, E)
    w1_t = params["fc1_w"].T.astype(compute_dtype)                          # (E, hidden)
    w2_t = params["fc2_w"].T.astype(compute_dtype)                          # (hidden, E)

    # Pack the four bias vectors into one lane-padded table (fewer tiny DMAs).
    bw = ((max(3 * E, hidden, 128) + 127) // 128) * 128
    biases = jnp.zeros((4, bw), jnp.float32)
    biases = biases.at[0, :3 * E].set(params["in_b"].reshape(-1) * qkv_scale)
    biases = biases.at[1, :E].set(params["out_b"].reshape(-1))
    biases = biases.at[2, :hidden].set(params["fc1_b"].reshape(-1))
    biases = biases.at[3, :E].set(params["fc2_b"].reshape(-1))

    kernel = functools.partial(_encoder_kernel, num_heads=num_heads)

    def const_spec(a):
        nd = a.ndim
        return pl.BlockSpec(a.shape, lambda i, _n=nd: (0,) * _n)

    w_bytes = jnp.dtype(compute_dtype).itemsize
    est = _vmem_bytes_estimate(bb, S, E, hidden, num_heads, bw, w_bytes)
    # Leave headroom but never request less than the v6e/v7x scoped default.
    vmem_limit = int(min(max(32 * 2**20, int(1.5 * est)), 96 * 2**20))

    return pl.pallas_call(
        kernel,
        out_shape=jax.ShapeDtypeStruct((B, S, E), jnp.float32),
        grid_spec=pltpu.PrefetchScalarGridSpec(
            num_scalar_prefetch=0,
            grid=(nb,),
            in_specs=[
                pl.BlockSpec((bb, S, E), lambda i: (i, 0, 0)),
                const_spec(sew), const_spec(w_in_t), const_spec(w_out_t),
                const_spec(w1_t), const_spec(w2_t), const_spec(biases),
            ],
            out_specs=pl.BlockSpec((bb, S, E), lambda i: (i, 0, 0)),
        ),
        compiler_params=pltpu.CompilerParams(
            dimension_semantics=("parallel",),
            vmem_limit_bytes=vmem_limit),
    )(x.astype(jnp.float32), sew, w_in_t, w_out_t, w1_t, w2_t, biases)


def make_position_encoding(seq_len, embed_dim):
    # Matches the PyTorch module exactly: pos = i / 10000**(2*j/E) with raw j.
    i = jnp.arange(seq_len, dtype=jnp.float32)[:, None]
    j = jnp.arange(embed_dim, dtype=jnp.float32)[None, :]
    pos = i / (10000.0 ** (2.0 * j / embed_dim))
    return jnp.where(jnp.arange(embed_dim)[None, :] % 2 == 0,
                     jnp.sin(pos), jnp.cos(pos)).astype(jnp.float32)


def init_params(key, embed_dim, seq_len, num_heads, hidden=128):
    ks = jax.random.split(key, 8)
    s = 0.1
    return {
        "pe": make_position_encoding(seq_len, embed_dim),
        "in_w": s * jax.random.normal(ks[0], (3 * embed_dim, embed_dim), jnp.float32),
        "in_b": s * jax.random.normal(ks[1], (1, 3 * embed_dim), jnp.float32),
        "out_w": s * jax.random.normal(ks[2], (embed_dim, embed_dim), jnp.float32),
        "out_b": s * jax.random.normal(ks[3], (1, embed_dim), jnp.float32),
        "fc1_w": s * jax.random.normal(ks[4], (hidden, embed_dim), jnp.float32),
        "fc1_b": s * jax.random.normal(ks[5], (1, hidden), jnp.float32),
        "fc2_w": s * jax.random.normal(ks[6], (embed_dim, hidden), jnp.float32),
        "fc2_b": s * jax.random.normal(ks[7], (1, embed_dim), jnp.float32),
        "ln_w": jnp.ones((seq_len, embed_dim), jnp.float32),
        "ln_b": jnp.zeros((seq_len, embed_dim), jnp.float32),
    }


def reference_forward(x, params, num_heads):
    """Plain-JAX reference mirroring PyTorch semantics (for validation)."""
    B, S, E = x.shape
    H, Dh = num_heads, E // num_heads
    eps = 1e-5
    x = x + params["pe"][None]
    qkv = jnp.einsum("bse,fe->bsf", x, params["in_w"]) + params["in_b"][None]
    q, k, v = qkv[..., :E], qkv[..., E:2 * E], qkv[..., 2 * E:]

    def split_heads(t):
        return t.reshape(B, S, H, Dh).transpose(0, 2, 1, 3)
    q, k, v = split_heads(q), split_heads(k), split_heads(v)
    scores = jnp.einsum("bhqd,bhkd->bhqk", q, k) / math.sqrt(Dh)
    p = jax.nn.softmax(scores, axis=-1)
    attn = jnp.einsum("bhqk,bhkd->bhqd", p, v).transpose(0, 2, 1, 3).reshape(B, S, E)
    attn = jnp.einsum("bse,fe->bsf", attn, params["out_w"]) + params["out_b"][None]

    def layer_norm(t):
        mu = jnp.mean(t, axis=(1, 2), keepdims=True)
        var = jnp.mean((t - mu) ** 2, axis=(1, 2), keepdims=True)
        return (t - mu) * lax.rsqrt(var + eps) * params["ln_w"][None] + params["ln_b"][None]

    y = layer_norm(x + attn)
    h1 = jnp.einsum("bse,fe->bsf", y, params["fc1_w"]) + params["fc1_b"][None]
    h1 = jnp.where(h1 >= 0, h1, 0.01 * h1)
    ff = jnp.einsum("bsf,ef->bse", h1, params["fc2_w"]) + params["fc2_b"][None]
    return layer_norm(y + ff)


if __name__ == "__main__":
    B, S, E, H = 2, 8, 32, 4
    key = jax.random.PRNGKey(0)
    kx, kp = jax.random.split(key)
    x = jax.random.normal(kx, (B, S, E), jnp.float32)
    params = init_params(kp, E, S, H)

    ref = reference_forward(x, params, H)

    # f32 MXU-operand path (exact semantics; tolerance loosened only for the
    # approximate EUP reciprocal used in the softmax denominator).
    out = jax.block_until_ready(encoder_forward(x, params, H))
    assert out.shape == (B, S, E)
    assert bool(jnp.all(jnp.isfinite(out)))
    assert jnp.allclose(out, ref, rtol=1e-2, atol=1e-2), "mismatch vs reference (f32)"

    # NOTE: compute_dtype=jnp.bfloat16 is the recommended MXU fast path on real
    # v5e/v6e/v7x hardware but is intentionally NOT exercised here: the CPU
    # interpret/emulation backend cannot execute BF16xBF16->F32 dots.
    print("KERNEL_OK")
</pallas_src>

<mosaic_0001>
module attributes {stable_mosaic.version = 11 : i64} {
  func.func @_encoder_kernel(%arg0: i32, %arg1: memref<1x8x32xf32, #tpu.memory_space<vmem>>, %arg2: memref<3x8x32xf32, #tpu.memory_space<vmem>>, %arg3: memref<32x96xf32, #tpu.memory_space<vmem>>, %arg4: memref<32x32xf32, #tpu.memory_space<vmem>>, %arg5: memref<32x128xf32, #tpu.memory_space<vmem>>, %arg6: memref<128x32xf32, #tpu.memory_space<vmem>>, %arg7: memref<4x128xf32, #tpu.memory_space<vmem>>, %arg8: memref<1x8x32xf32, #tpu.memory_space<vmem>>) attributes {dimension_semantics = [#tpu.dimension_semantics<parallel>], iteration_bounds = array<i64: 2>, scalar_prefetch = 0 : i64, scratch_operands = 0 : i64, tpu.core_type = #tpu.core_type<tc>, window_params = [{transform_indices = @transform_0, window_bounds = array<i64: 1, 8, 32>}, {pipeline_mode = #tpu.pipeline_mode<synchronous>, transform_indices = @transform_1, window_bounds = array<i64: 3, 8, 32>}, {pipeline_mode = #tpu.pipeline_mode<synchronous>, transform_indices = @transform_2, window_bounds = array<i64: 32, 96>}, {pipeline_mode = #tpu.pipeline_mode<synchronous>, transform_indices = @transform_3, window_bounds = array<i64: 32, 32>}, {pipeline_mode = #tpu.pipeline_mode<synchronous>, transform_indices = @transform_4, window_bounds = array<i64: 32, 128>}, {pipeline_mode = #tpu.pipeline_mode<synchronous>, transform_indices = @transform_5, window_bounds = array<i64: 128, 32>}, {pipeline_mode = #tpu.pipeline_mode<synchronous>, transform_indices = @transform_6, window_bounds = array<i64: 4, 128>}, {transform_indices = @transform_7, window_bounds = array<i64: 1, 8, 32>}]} {
    %c0 = arith.constant 0 : index
    %c0_0 = arith.constant 0 : index
    %c0_1 = arith.constant 0 : index
    %0 = vector.load %arg2[%c0, %c0_0, %c0_1] : memref<3x8x32xf32, #tpu.memory_space<vmem>>, vector<1x8x32xf32>
    %1 = vector.shape_cast %0 : vector<1x8x32xf32> to vector<8x32xf32>
    %c1 = arith.constant 1 : index
    %c0_2 = arith.constant 0 : index
    %c0_3 = arith.constant 0 : index
    %2 = vector.load %arg2[%c1, %c0_2, %c0_3] : memref<3x8x32xf32, #tpu.memory_space<vmem>>, vector<1x8x32xf32>
    %3 = vector.shape_cast %2 : vector<1x8x32xf32> to vector<8x32xf32>
    %c2 = arith.constant 2 : index
    %c0_4 = arith.constant 0 : index
    %c0_5 = arith.constant 0 : index
    %4 = vector.load %arg2[%c2, %c0_4, %c0_5] : memref<3x8x32xf32, #tpu.memory_space<vmem>>, vector<1x8x32xf32>
    %5 = vector.shape_cast %4 : vector<1x8x32xf32> to vector<8x32xf32>
    %c0_6 = arith.constant 0 : index
    %c0_7 = arith.constant 0 : index
    %6 = vector.load %arg7[%c0_6, %c0_7] : memref<4x128xf32, #tpu.memory_space<vmem>>, vector<1x96xf32>
    %c1_8 = arith.constant 1 : index
    %c0_9 = arith.constant 0 : index
    %7 = vector.load %arg7[%c1_8, %c0_9] : memref<4x128xf32, #tpu.memory_space<vmem>>, vector<1x32xf32>
    %c2_10 = arith.constant 2 : index
    %c0_11 = arith.constant 0 : index
    %8 = vector.load %arg7[%c2_10, %c0_11] : memref<4x128xf32, #tpu.memory_space<vmem>>, vector<1x128xf32>
    %c3 = arith.constant 3 : index
    %c0_12 = arith.constant 0 : index
    %9 = vector.load %arg7[%c3, %c0_12] : memref<4x128xf32, #tpu.memory_space<vmem>>, vector<1x32xf32>
    %c0_13 = arith.constant 0 : index
    %c0_14 = arith.constant 0 : index
    %c0_15 = arith.constant 0 : index
    %10 = vector.load %arg1[%c0_13, %c0_14, %c0_15] : memref<1x8x32xf32, #tpu.memory_space<vmem>>, vector<1x8x32xf32>
    %11 = vector.shape_cast %1 : vector<8x32xf32> to vector<1x8x32xf32>
    %12 = arith.addf %10, %11 : vector<1x8x32xf32>
    %13 = vector.shape_cast %12 : vector<1x8x32xf32> to vector<8x32xf32>
    %c0_16 = arith.constant 0 : index
    %c0_17 = arith.constant 0 : index
    %14 = vector.load %arg3[%c0_16, %c0_17] : memref<32x96xf32, #tpu.memory_space<vmem>>, vector<32x96xf32>
    %cst = arith.constant dense<0.000000e+00> : vector<8x96xf32>
    %15 = tpu.matmul %13, %14, %cst {dimension_numbers = #tpu.dot_dimension_numbers<[1], [0], [0], [1], [0, 0, 1, 1], [], []>} : vector<8x32xf32>, vector<32x96xf32>, vector<8x96xf32> -> vector<8x96xf32>
    %16 = vector.broadcast %6 : vector<1x96xf32> to vector<8x96xf32>
    %17 = arith.addf %15, %16 : vector<8x96xf32>
    %18 = vector.shape_cast %17 : vector<8x96xf32> to vector<1x8x12x8xf32>
    %19 = tpu.transpose %18, [0, 2, 1, 3] : vector<1x8x12x8xf32> -> vector<1x12x8x8xf32>
    %20 = vector.extract_strided_slice %19 {offsets = [0, 0, 0, 0], sizes = [1, 4, 8, 8], strides = [1, 1, 1, 1]} : vector<1x12x8x8xf32> to vector<1x4x8x8xf32>
    %21 = vector.shape_cast %20 : vector<1x4x8x8xf32> to vector<4x8x8xf32>
    %22 = vector.extract_strided_slice %19 {offsets = [0, 4, 0, 0], sizes = [1, 4, 8, 8], strides = [1, 1, 1, 1]} : vector<1x12x8x8xf32> to vector<1x4x8x8xf32>
    %23 = vector.shape_cast %22 : vector<1x4x8x8xf32> to vector<4x8x8xf32>
    %24 = vector.extract_strided_slice %19 {offsets = [0, 8, 0, 0], sizes = [1, 4, 8, 8], strides = [1, 1, 1, 1]} : vector<1x12x8x8xf32> to vector<1x4x8x8xf32>
    %25 = vector.shape_cast %24 : vector<1x4x8x8xf32> to vector<4x8x8xf32>
    "tpu.trace_start"() <{level = 10 : i32, message = "bqd,bkd->bqk"}> : () -> ()
    %cst_18 = arith.constant dense<0.000000e+00> : vector<4x8x8xf32>
    %26 = tpu.matmul %21, %23, %cst_18 {dimension_numbers = #tpu.dot_dimension_numbers<[2], [2], [1], [1], [0, 0, 0, 1, 1, 1], [0], [0]>} : vector<4x8x8xf32>, vector<4x8x8xf32>, vector<4x8x8xf32> -> vector<4x8x8xf32>
    "tpu.trace_stop"() : () -> ()
    %cst_19 = arith.constant dense<0xFF800000> : vector<4x8xf32>
    %27 = vector.multi_reduction <maximumf>, %26, %cst_19 [2] : vector<4x8x8xf32> to vector<4x8xf32>
    %28 = vector.shape_cast %27 : vector<4x8xf32> to vector<4x8x1xf32>
    %29 = vector.broadcast %28 : vector<4x8x1xf32> to vector<4x8x8xf32>
    %30 = arith.subf %26, %29 : vector<4x8x8xf32>
    %31 = math.exp %30 : vector<4x8x8xf32>
    %cst_20 = arith.constant dense<0.000000e+00> : vector<4x8xf32>
    %32 = vector.multi_reduction <add>, %31, %cst_20 [2] : vector<4x8x8xf32> to vector<4x8xf32>
    %33 = vector.shape_cast %32 : vector<4x8xf32> to vector<4x8x1xf32>
    %34 = tpu.reciprocal %33 {approx = true} : vector<4x8x1xf32> -> vector<4x8x1xf32>
    %35 = vector.broadcast %34 : vector<4x8x1xf32> to vector<4x8x8xf32>
    %36 = arith.mulf %31, %35 : vector<4x8x8xf32>
    "tpu.trace_start"() <{level = 10 : i32, message = "bqk,bkd->bqd"}> : () -> ()
    %cst_21 = arith.constant dense<0.000000e+00> : vector<4x8x8xf32>
    %37 = tpu.matmul %36, %25, %cst_21 {dimension_numbers = #tpu.dot_dimension_numbers<[2], [1], [1], [2], [0, 0, 0, 1, 1, 2], [0], [0]>} : vector<4x8x8xf32>, vector<4x8x8xf32>, vector<4x8x8xf32> -> vector<4x8x8xf32>
    "tpu.trace_stop"() : () -> ()
    %38 = vector.shape_cast %37 : vector<4x8x8xf32> to vector<1x4x8x8xf32>
    %39 = tpu.transpose %38, [0, 2, 1, 3] : vector<1x4x8x8xf32> -> vector<1x8x4x8xf32>
    %40 = vector.shape_cast %39 : vector<1x8x4x8xf32> to vector<8x32xf32>
    %c0_22 = arith.constant 0 : index
    %c0_23 = arith.constant 0 : index
    %41 = vector.load %arg4[%c0_22, %c0_23] : memref<32x32xf32, #tpu.memory_space<vmem>>, vector<32x32xf32>
    %cst_24 = arith.constant dense<0.000000e+00> : vector<8x32xf32>
    %42 = tpu.matmul %40, %41, %cst_24 {dimension_numbers = #tpu.dot_dimension_numbers<[1], [0], [0], [1], [0, 0, 1, 1], [], []>} : vector<8x32xf32>, vector<32x32xf32>, vector<8x32xf32> -> vector<8x32xf32>
    %43 = vector.broadcast %7 : vector<1x32xf32> to vector<8x32xf32>
    %44 = arith.addf %42, %43 : vector<8x32xf32>
    %45 = arith.addf %13, %44 : vector<8x32xf32>
    %46 = vector.shape_cast %45 : vector<8x32xf32> to vector<1x8x32xf32>
    %cst_25 = arith.constant dense<0.000000e+00> : vector<1xf32>
    %47 = vector.multi_reduction <add>, %46, %cst_25 [1, 2] : vector<1x8x32xf32> to vector<1xf32>
    %48 = vector.shape_cast %47 : vector<1xf32> to vector<1x1x1xf32>
    %cst_26 = arith.constant 3.906250e-03 : f32
    %49 = vector.broadcast %cst_26 : f32 to vector<1x1x1xf32>
    %50 = arith.mulf %48, %49 : vector<1x1x1xf32>
    %51 = arith.mulf %46, %46 : vector<1x8x32xf32>
    %cst_27 = arith.constant dense<0.000000e+00> : vector<1xf32>
    %52 = vector.multi_reduction <add>, %51, %cst_27 [1, 2] : vector<1x8x32xf32> to vector<1xf32>
    %53 = vector.shape_cast %52 : vector<1xf32> to vector<1x1x1xf32>
    %cst_28 = arith.constant 3.906250e-03 : f32
    %54 = vector.broadcast %cst_28 : f32 to vector<1x1x1xf32>
    %55 = arith.mulf %53, %54 : vector<1x1x1xf32>
    %56 = arith.mulf %50, %50 : vector<1x1x1xf32>
    %57 = arith.subf %55, %56 : vector<1x1x1xf32>
    %cst_29 = arith.constant 0.000000e+00 : f32
    %58 = vector.broadcast %cst_29 : f32 to vector<1x1x1xf32>
    %59 = arith.maximumf %57, %58 : vector<1x1x1xf32>
    %60 = vector.broadcast %50 : vector<1x1x1xf32> to vector<1x8x32xf32>
    %61 = arith.subf %46, %60 : vector<1x8x32xf32>
    %cst_30 = arith.constant 9.99999974E-6 : f32
    %62 = vector.broadcast %cst_30 : f32 to vector<1x1x1xf32>
    %63 = arith.addf %59, %62 : vector<1x1x1xf32>
    %64 = math.rsqrt %63 : vector<1x1x1xf32>
    %65 = vector.broadcast %64 : vector<1x1x1xf32> to vector<1x8x32xf32>
    %66 = arith.mulf %61, %65 : vector<1x8x32xf32>
    %67 = vector.shape_cast %3 : vector<8x32xf32> to vector<1x8x32xf32>
    %68 = arith.mulf %66, %67 : vector<1x8x32xf32>
    %69 = vector.shape_cast %5 : vector<8x32xf32> to vector<1x8x32xf32>
    %70 = arith.addf %68, %69 : vector<1x8x32xf32>
    %71 = vector.shape_cast %70 : vector<1x8x32xf32> to vector<8x32xf32>
    %c0_31 = arith.constant 0 : index
    %c0_32 = arith.constant 0 : index
    %72 = vector.load %arg5[%c0_31, %c0_32] : memref<32x128xf32, #tpu.memory_space<vmem>>, vector<32x128xf32>
    %cst_33 = arith.constant dense<0.000000e+00> : vector<8x128xf32>
    %73 = tpu.matmul %71, %72, %cst_33 {dimension_numbers = #tpu.dot_dimension_numbers<[1], [0], [0], [1], [0, 0, 1, 1], [], []>} : vector<8x32xf32>, vector<32x128xf32>, vector<8x128xf32> -> vector<8x128xf32>
    %74 = vector.broadcast %8 : vector<1x128xf32> to vector<8x128xf32>
    %75 = arith.addf %73, %74 : vector<8x128xf32>
    %cst_34 = arith.constant 0.000000e+00 : f32
    %76 = vector.broadcast %cst_34 : f32 to vector<8x128xf32>
    %77 = arith.cmpf ogt, %75, %76 : vector<8x128xf32>
    %cst_35 = arith.constant 0.00999999977 : f32
    %78 = vector.broadcast %cst_35 : f32 to vector<8x128xf32>
    %79 = arith.mulf %78, %75 : vector<8x128xf32>
    %80 = arith.select %77, %75, %79 : vector<8x128xi1>, vector<8x128xf32>
    %c0_36 = arith.constant 0 : index
    %c0_37 = arith.constant 0 : index
    %81 = vector.load %arg6[%c0_36, %c0_37] : memref<128x32xf32, #tpu.memory_space<vmem>>, vector<128x32xf32>
    %cst_38 = arith.constant dense<0.000000e+00> : vector<8x32xf32>
    %82 = tpu.matmul %80, %81, %cst_38 {dimension_numbers = #tpu.dot_dimension_numbers<[1], [0], [0], [1], [0, 0, 1, 1], [], []>} : vector<8x128xf32>, vector<128x32xf32>, vector<8x32xf32> -> vector<8x32xf32>
    %83 = vector.broadcast %9 : vector<1x32xf32> to vector<8x32xf32>
    %84 = arith.addf %82, %83 : vector<8x32xf32>
    %85 = arith.addf %71, %84 : vector<8x32xf32>
    %86 = vector.shape_cast %85 : vector<8x32xf32> to vector<1x8x32xf32>
    %cst_39 = arith.constant dense<0.000000e+00> : vector<1xf32>
    %87 = vector.multi_reduction <add>, %86, %cst_39 [1, 2] : vector<1x8x32xf32> to vector<1xf32>
    %88 = vector.shape_cast %87 : vector<1xf32> to vector<1x1x1xf32>
    %cst_40 = arith.constant 3.906250e-03 : f32
    %89 = vector.broadcast %cst_40 : f32 to vector<1x1x1xf32>
    %90 = arith.mulf %88, %89 : vector<1x1x1xf32>
    %91 = arith.mulf %86, %86 : vector<1x8x32xf32>
    %cst_41 = arith.constant dense<0.000000e+00> : vector<1xf32>
    %92 = vector.multi_reduction <add>, %91, %cst_41 [1, 2] : vector<1x8x32xf32> to vector<1xf32>
    %93 = vector.shape_cast %92 : vector<1xf32> to vector<1x1x1xf32>
    %cst_42 = arith.constant 3.906250e-03 : f32
    %94 = vector.broadcast %cst_42 : f32 to vector<1x1x1xf32>
    %95 = arith.mulf %93, %94 : vector<1x1x1xf32>
    %96 = arith.mulf %90, %90 : vector<1x1x1xf32>
    %97 = arith.subf %95, %96 : vector<1x1x1xf32>
    %cst_43 = arith.constant 0.000000e+00 : f32
    %98 = vector.broadcast %cst_43 : f32 to vector<1x1x1xf32>
    %99 = arith.maximumf %97, %98 : vector<1x1x1xf32>
    %100 = vector.broadcast %90 : vector<1x1x1xf32> to vector<1x8x32xf32>
    %101 = arith.subf %86, %100 : vector<1x8x32xf32>
    %cst_44 = arith.constant 9.99999974E-6 : f32
    %102 = vector.broadcast %cst_44 : f32 to vector<1x1x1xf32>
    %103 = arith.addf %99, %102 : vector<1x1x1xf32>
    %104 = math.rsqrt %103 : vector<1x1x1xf32>
    %105 = vector.broadcast %104 : vector<1x1x1xf32> to vector<1x8x32xf32>
    %106 = arith.mulf %101, %105 : vector<1x8x32xf32>
    %107 = vector.shape_cast %3 : vector<8x32xf32> to vector<1x8x32xf32>
    %108 = arith.mulf %106, %107 : vector<1x8x32xf32>
    %109 = vector.shape_cast %5 : vector<8x32xf32> to vector<1x8x32xf32>
    %110 = arith.addf %108, %109 : vector<1x8x32xf32>
    %111 = vector.shape_cast %110 : vector<1x8x32xf32> to vector<8x32xf32>
    %112 = vector.shape_cast %111 : vector<8x32xf32> to vector<1x8x32xf32>
    %c0_45 = arith.constant 0 : index
    %c0_46 = arith.constant 0 : index
    %c0_47 = arith.constant 0 : index
    %113 = vector.load %arg8[%c0_45, %c0_46, %c0_47] : memref<1x8x32xf32, #tpu.memory_space<vmem>>, vector<1x8x32xf32>
    tpu.vector_store %arg8[%c0_45, %c0_46, %c0_47], %112 {strides = array<i32>} : memref<1x8x32xf32, #tpu.memory_space<vmem>>, vector<1x8x32xf32>,
    return
  }
  func.func @transform_0(%arg0: i32) -> (i32, i32, i32) {
    %c0_i32 = arith.constant 0 : i32
    %c0_i32_0 = arith.constant 0 : i32
    %c0_i32_1 = arith.constant 0 : i32
    return %arg0, %c0_i32, %c0_i32_0 : i32, i32, i32
  }
  func.func @transform_1(%arg0: i32) -> (i32, i32, i32) {
    %c0_i32 = arith.constant 0 : i32
    %c0_i32_0 = arith.constant 0 : i32
    %c0_i32_1 = arith.constant 0 : i32
    %c0_i32_2 = arith.constant 0 : i32
    return %c0_i32, %c0_i32_0, %c0_i32_1 : i32, i32, i32
  }
  func.func @transform_2(%arg0: i32) -> (i32, i32) {
    %c0_i32 = arith.constant 0 : i32
    %c0_i32_0 = arith.constant 0 : i32
    %c0_i32_1 = arith.constant 0 : i32
    return %c0_i32, %c0_i32_0 : i32, i32
  }
  func.func @transform_3(%arg0: i32) -> (i32, i32) {
    %c0_i32 = arith.constant 0 : i32
    %c0_i32_0 = arith.constant 0 : i32
    %c0_i32_1 = arith.constant 0 : i32
    return %c0_i32, %c0_i32_0 : i32, i32
  }
  func.func @transform_4(%arg0: i32) -> (i32, i32) {
    %c0_i32 = arith.constant 0 : i32
    %c0_i32_0 = arith.constant 0 : i32
    %c0_i32_1 = arith.constant 0 : i32
    return %c0_i32, %c0_i32_0 : i32, i32
  }
  func.func @transform_5(%arg0: i32) -> (i32, i32) {
    %c0_i32 = arith.constant 0 : i32
    %c0_i32_0 = arith.constant 0 : i32
    %c0_i32_1 = arith.constant 0 : i32
    return %c0_i32, %c0_i32_0 : i32, i32
  }
  func.func @transform_6(%arg0: i32) -> (i32, i32) {
    %c0_i32 = arith.constant 0 : i32
    %c0_i32_0 = arith.constant 0 : i32
    %c0_i32_1 = arith.constant 0 : i32
    return %c0_i32, %c0_i32_0 : i32, i32
  }
  func.func @transform_7(%arg0: i32) -> (i32, i32, i32) {
    %c0_i32 = arith.constant 0 : i32
    %c0_i32_0 = arith.constant 0 : i32
    %c0_i32_1 = arith.constant 0 : i32
    return %arg0, %c0_i32, %c0_i32_0 : i32, i32, i32
  }
}

</mosaic_0001>

<llo_original>
// kernel: tpu_custom_call.1
$region0: #{tpu_custom_call.1}
  #allocation0 [shape = 'u32[]', space=smem, size = 0x4, offset = 0x4, fixed_abs, tag = 'smem constant byte address 0x4 - core index']
  #allocation1 [shape = 'u32[144,128]{1,0:T(1,128)}', space=vmem, size = 0x12000, scoped, tag = 'internal scratch']
  %s0 = inlined_call_operand.vmem [shape: f32[2,8,32], index: 0, kind: input, shape index: {}]
  %s1 = inlined_call_operand.vmem [shape: f32[3,8,32], index: 1, kind: input, shape index: {}]
  %s2 = inlined_call_operand.vmem [shape: f32[32,96], index: 2, kind: input, shape index: {}]
  %s3 = inlined_call_operand.vmem [shape: f32[32,32], index: 3, kind: input, shape index: {}]
  %s4 = inlined_call_operand.vmem [shape: f32[32,128], index: 4, kind: input, shape index: {}]
  %s5 = inlined_call_operand.vmem [shape: f32[128,32], index: 5, kind: input, shape index: {}]
  %s6 = inlined_call_operand.vmem [shape: f32[4,128], index: 6, kind: input, shape index: {}]
  %s7 = inlined_call_operand.hbm [shape: f32[2,8,32], index: 7, kind: output, shape index: {}]
  %s8 = sld [smem:[#allocation0]]
  $region61: #{tpu_custom_call.1} parent=0
    _
  %s10 = ssub.s32 1, %s8
  %s11 = scalar_select 0, %s10, %s8
  $region1: #{tpu_custom_call.1} parent=0
    #allocation2 [shape = 'u8[8192]{0}', space=vmem, size = 0x2000, scoped, tag = 'output window, operand 0']
    #allocation3 [shape = 's32[2]{0}', space=sflag, size = 0x8, scoped, tag = 'scoped memory for tpu_custom_call.1']
    %12 = vsyncpa [#allocation3], 0
    %s13 = scalar_lea.sflag [#allocation3], 1
    %14 = vsyncpa %s13, 0
    loop: start=0, step=1, limit=4
    $region2: #{tpu_custom_call.1} parent=1 // loop_pre_header
      _
    $region3: #{tpu_custom_call.1} parent=1 // loop_header
      %s16 = sphi 0, %s20
      %p17 = scmp.ge.s32.totalorder %s16, 4
      %s26 = sphi 0, %s28
      %s29 = sphi 0, %s26
      %s30 = sphi 0, %s29
      %s46 = sphi 0, %s30
      %s50 = sphi 0, %s50
      %s52 = sphi 0, %s50
      %s53 = sphi 0, %s52
      %s67 = sphi 0, %s53
      %s71 = sphi 0, %s71
      %s73 = sphi 0, %s71
      %s74 = sphi 0, %s73
      %s88 = sphi 0, %s74
      %s92 = sphi 0, %s92
      %s94 = sphi 0, %s92
      %s95 = sphi 0, %s94
      %s109 = sphi 0, %s95
      %s113 = sphi 0, %s113
      %s115 = sphi 0, %s113
      %s116 = sphi 0, %s115
      %s130 = sphi 0, %s116
      %s134 = sphi 0, %s134
      %s136 = sphi 0, %s134
      %s137 = sphi 0, %s136
      %s151 = sphi 0, %s137
      %s155 = sphi 0, %s155
      %s157 = sphi 0, %s155
      %s158 = sphi 0, %s157
      %s172 = sphi 0, %s158
      %s178 = sphi 0, %s180
      %s181 = sphi 0, %s178
      %s182 = sphi 0, %s181
      %s198 = sphi 0, %s182
    $region4: #{tpu_custom_call.1} parent=1 // loop_header_branch
      %19 = sbr.rel (%p17) target = $region8
    $region5: #{tpu_custom_call.1} parent=1 // loop_body
      %s21 = ssub.s32 %s16, 1
      %s22 = ssub.s32 %s16, 2
      %s23 = sadd.s32 %s16, 1
      %s24 = ssub.s32 %s16, %s23
      %p25 = scmp.eq.s32.totalorder %s24, 0
      %s27 = sadd.s32 %s26, 1
      %s28 = scalar_select %p25, %s26, %s27
      %p31 = pneg %p25
      %p32 = scmp.eq.s32.totalorder %s16, 1
      %p33 = por %p31, %p32
      %p34 = scmp.ne.s32.totalorder %s26, %s29
      %p35 = scmp.eq.s32.totalorder %s16, 0
      %p36 = por %p34, %p35
      %p37 = scmp.ne.s32.totalorder %s26, %s29
      %p38 = scmp.eq.s32.totalorder %s21, 1
      %p39 = por %p37, %p38
      %p40 = scmp.ne.s32.totalorder %s29, %s30
      %p41 = scmp.eq.s32.totalorder %s21, 0
      %p42 = por %p40, %p41
      %p43 = scmp.ne.s32.totalorder %s29, %s30
      %p44 = scmp.eq.s32.totalorder %s22, 1
      %p45 = por %p43, %p44
      %p47 = scmp.ne.s32.totalorder %s30, %s46
      %p48 = scmp.eq.s32.totalorder %s22, 0
      %p49 = por %p47, %p48
      %s51 = sadd.s32 %s50, 1
      %p54 = scmp.eq.s32.totalorder %s16, 1
      %p55 = scmp.ne.s32.totalorder %s50, %s52
      %p56 = scmp.eq.s32.totalorder %s16, 0
      %p57 = por %p55, %p56
      %p58 = scmp.ne.s32.totalorder %s50, %s52
      %p59 = scmp.eq.s32.totalorder %s21, 1
      %p60 = por %p58, %p59
      %p61 = scmp.ne.s32.totalorder %s52, %s53
      %p62 = scmp.eq.s32.totalorder %s21, 0
      %p63 = por %p61, %p62
      %p64 = scmp.ne.s32.totalorder %s52, %s53
      %p65 = scmp.eq.s32.totalorder %s22, 1
      %p66 = por %p64, %p65
      %p68 = scmp.ne.s32.totalorder %s53, %s67
      %p69 = scmp.eq.s32.totalorder %s22, 0
      %p70 = por %p68, %p69
      %s72 = sadd.s32 %s71, 1
      %p75 = scmp.eq.s32.totalorder %s16, 1
      %p76 = scmp.ne.s32.totalorder %s71, %s73
      %p77 = scmp.eq.s32.totalorder %s16, 0
      %p78 = por %p76, %p77
      %p79 = scmp.ne.s32.totalorder %s71, %s73
      %p80 = scmp.eq.s32.totalorder %s21, 1
      %p81 = por %p79, %p80
      %p82 = scmp.ne.s32.totalorder %s73, %s74
      %p83 = scmp.eq.s32.totalorder %s21, 0
      %p84 = por %p82, %p83
      %p85 = scmp.ne.s32.totalorder %s73, %s74
      %p86 = scmp.eq.s32.totalorder %s22, 1
      %p87 = por %p85, %p86
      %p89 = scmp.ne.s32.totalorder %s74, %s88
      %p90 = scmp.eq.s32.totalorder %s22, 0
      %p91 = por %p89, %p90
      %s93 = sadd.s32 %s92, 1
      %p96 = scmp.eq.s32.totalorder %s16, 1
      %p97 = scmp.ne.s32.totalorder %s92, %s94
      %p98 = scmp.eq.s32.totalorder %s16, 0
      %p99 = por %p97, %p98
      %p100 = scmp.ne.s32.totalorder %s92, %s94
      %p101 = scmp.eq.s32.totalorder %s21, 1
      %p102 = por %p100, %p101
      %p103 = scmp.ne.s32.totalorder %s94, %s95
      %p104 = scmp.eq.s32.totalorder %s21, 0
      %p105 = por %p103, %p104
      %p106 = scmp.ne.s32.totalorder %s94, %s95
      %p107 = scmp.eq.s32.totalorder %s22, 1
      %p108 = por %p106, %p107
      %p110 = scmp.ne.s32.totalorder %s95, %s109
      %p111 = scmp.eq.s32.totalorder %s22, 0
      %p112 = por %p110, %p111
      %s114 = sadd.s32 %s113, 1
      %p117 = scmp.eq.s32.totalorder %s16, 1
      %p118 = scmp.ne.s32.totalorder %s113, %s115
      %p119 = scmp.eq.s32.totalorder %s16, 0
      %p120 = por %p118, %p119
      %p121 = scmp.ne.s32.totalorder %s113, %s115
      %p122 = scmp.eq.s32.totalorder %s21, 1
      %p123 = por %p121, %p122
      %p124 = scmp.ne.s32.totalorder %s115, %s116
      %p125 = scmp.eq.s32.totalorder %s21, 0
      %p126 = por %p124, %p125
      %p127 = scmp.ne.s32.totalorder %s115, %s116
      %p128 = scmp.eq.s32.totalorder %s22, 1
      %p129 = por %p127, %p128
      %p131 = scmp.ne.s32.totalorder %s116, %s130
      %p132 = scmp.eq.s32.totalorder %s22, 0
      %p133 = por %p131, %p132
      %s135 = sadd.s32 %s134, 1
      %p138 = scmp.eq.s32.totalorder %s16, 1
      %p139 = scmp.ne.s32.totalorder %s134, %s136
      %p140 = scmp.eq.s32.totalorder %s16, 0
      %p141 = por %p139, %p140
      %p142 = scmp.ne.s32.totalorder %s134, %s136
      %p143 = scmp.eq.s32.totalorder %s21, 1
      %p144 = por %p142, %p143
      %p145 = scmp.ne.s32.totalorder %s136, %s137
      %p146 = scmp.eq.s32.totalorder %s21, 0
      %p147 = por %p145, %p146
      %p148 = scmp.ne.s32.totalorder %s136, %s137
      %p149 = scmp.eq.s32.totalorder %s22, 1
      %p150 = por %p148, %p149
      %p152 = scmp.ne.s32.totalorder %s137, %s151
      %p153 = scmp.eq.s32.totalorder %s22, 0
      %p154 = por %p152, %p153
      %s156 = sadd.s32 %s155, 1
      %p159 = scmp.eq.s32.totalorder %s16, 1
      %p160 = scmp.ne.s32.totalorder %s155, %s157
      %p161 = scmp.eq.s32.totalorder %s16, 0
      %p162 = por %p160, %p161
      %p163 = scmp.ne.s32.totalorder %s155, %s157
      %p164 = scmp.eq.s32.totalorder %s21, 1
      %p165 = por %p163, %p164
      %p166 = scmp.ne.s32.totalorder %s157, %s158
      %p167 = scmp.eq.s32.totalorder %s21, 0
      %p168 = por %p166, %p167
      %p169 = scmp.ne.s32.totalorder %s157, %s158
      %p170 = scmp.eq.s32.totalorder %s22, 1
      %p171 = por %p169, %p170
      %p173 = scmp.ne.s32.totalorder %s158, %s172
      %p174 = scmp.eq.s32.totalorder %s22, 0
      %p175 = por %p173, %p174
      %s176 = ssub.s32 %s16, %s23
      %p177 = scmp.eq.s32.totalorder %s176, 0
      %s179 = sadd.s32 %s178, 1
      %s180 = scalar_select %p177, %s178, %s179
      %p183 = pneg %p177
      %p184 = scmp.eq.s32.totalorder %s16, 1
      %p185 = por %p183, %p184
      %p186 = scmp.ne.s32.totalorder %s178, %s181
      %p187 = scmp.eq.s32.totalorder %s16, 0
      %p188 = por %p186, %p187
      %p189 = scmp.ne.s32.totalorder %s178, %s181
      %p190 = scmp.eq.s32.totalorder %s21, 1
      %p191 = por %p189, %p190
      %p192 = scmp.ne.s32.totalorder %s181, %s182
      %p193 = scmp.eq.s32.totalorder %s21, 0
      %p194 = por %p192, %p193
      %p195 = scmp.ne.s32.totalorder %s181, %s182
      %p196 = scmp.eq.s32.totalorder %s22, 1
      %p197 = por %p195, %p196
      %p199 = scmp.ne.s32.totalorder %s182, %s198
      %p200 = scmp.eq.s32.totalorder %s22, 0
      %p201 = por %p199, %p200
      %p202 = scmp.le.s32.totalorder 1, %s16
      %p203 = scmp.lt.s32.totalorder %s16, 3
      %p204 = pnand %p202, %p203
      %p205 = pneg %p204
      // Predicated region
      $region9: #{tpu_custom_call.1} parent=5 // pred_check
        _
      $region10: #{tpu_custom_call.1} parent=5 // pred_check_branch
        %207 = sbr.rel (%p204) target = $region12
      $region11: #{tpu_custom_call.1} parent=5 // pred_region
        %s208 = ssub.s32 %s16, 1
        // Predicated region
        $region13: #{tpu_custom_call.1} parent=11 // pred_check
          %p209 = pneg %p63
        $region14: #{tpu_custom_call.1} parent=11 // pred_check_branch
          %211 = sbr.rel (%p209) target = $region16
        $region15: #{tpu_custom_call.1} parent=11 // pred_region
          _
        $region16: #{tpu_custom_call.1} parent=11 // pred_fallthru
          _
        // Predicated region
        $region17: #{tpu_custom_call.1} parent=11 // pred_check
          %p212 = pneg %p84
        $region18: #{tpu_custom_call.1} parent=11 // pred_check_branch
          %214 = sbr.rel (%p212) target = $region20
        $region19: #{tpu_custom_call.1} parent=11 // pred_region
          _
        $region20: #{tpu_custom_call.1} parent=11 // pred_fallthru
          _
        // Predicated region
        $region21: #{tpu_custom_call.1} parent=11 // pred_check
          %p215 = pneg %p105
        $region22: #{tpu_custom_call.1} parent=11 // pred_check_branch
          %217 = sbr.rel (%p215) target = $region24
        $region23: #{tpu_custom_call.1} parent=11 // pred_region
          _
        $region24: #{tpu_custom_call.1} parent=11 // pred_fallthru
          _
        // Predicated region
        $region25: #{tpu_custom_call.1} parent=11 // pred_check
          %p218 = pneg %p126
        $region26: #{tpu_custom_call.1} parent=11 // pred_check_branch
          %220 = sbr.rel (%p218) target = $region28
        $region27: #{tpu_custom_call.1} parent=11 // pred_region
          _
        $region28: #{tpu_custom_call.1} parent=11 // pred_fallthru
          _
        // Predicated region
        $region29: #{tpu_custom_call.1} parent=11 // pred_check
          %p221 = pneg %p147
        $region30: #{tpu_custom_call.1} parent=11 // pred_check_branch
          %223 = sbr.rel (%p221) target = $region32
        $region31: #{tpu_custom_call.1} parent=11 // pred_region
          _
        $region32: #{tpu_custom_call.1} parent=11 // pred_fallthru
          _
        // Predicated region
        $region33: #{tpu_custom_call.1} parent=11 // pred_check
          %p224 = pneg %p168
        $region34: #{tpu_custom_call.1} parent=11 // pred_check_branch
          %226 = sbr.rel (%p224) target = $region36
        $region35: #{tpu_custom_call.1} parent=11 // pred_region
          _
        $region36: #{tpu_custom_call.1} parent=11 // pred_fallthru
          _
      $region12: #{tpu_custom_call.1} parent=5 // pred_fallthru
        _
      %p227 = scmp.lt.s32.totalorder %s16, 2
      // Predicated region
      $region37: #{tpu_custom_call.1} parent=5 // pred_check
        %p228 = pneg %p227
      $region38: #{tpu_custom_call.1} parent=5 // pred_check_branch
        %230 = sbr.rel (%p228) target = $region40
      $region39: #{tpu_custom_call.1} parent=5 // pred_region
        // Predicated region
        $region41: #{tpu_custom_call.1} parent=39 // pred_check
          %p231 = pneg %p36
        $region42: #{tpu_custom_call.1} parent=39 // pred_check_branch
          %233 = sbr.rel (%p231) target = $region44
        $region43: #{tpu_custom_call.1} parent=39 // pred_region
          %p234 = scmp.lt.s32.totalorder %s16, 1
          %s235 = scalar_select %p234, %s16, 1
          %s236 = smul.addr %s235, 8
          %s237 = scalar_lea.vmem %s0, %s236
        $region44: #{tpu_custom_call.1} parent=39 // pred_fallthru
          _
      $region40: #{tpu_custom_call.1} parent=5 // pred_fallthru
        _
      %p238 = scmp.le.s32.totalorder 1, %s16
      %p239 = scmp.lt.s32.totalorder %s16, 3
      %p240 = pnand %p238, %p239
      %p241 = pneg %p240
      // Predicated region
      $region45: #{tpu_custom_call.1} parent=5 // pred_check
        _
      $region46: #{tpu_custom_call.1} parent=5 // pred_check_branch
        %243 = sbr.rel (%p240) target = $region48
      $region47: #{tpu_custom_call.1} parent=5 // pred_region
        %s244 = ssub.s32 %s16, 1
        %p245 = scmp.lt.s32.totalorder %s21, 1
        %s246 = scalar_select %p245, %s21, 1
        %s247 = smul.addr %s246, 8
        %s248 = scalar_lea.vmem %s0, %s247
        %p249 = pneg %p42
        %p250 = pneg %p39
        %p251 = pneg %p63
        %p252 = pneg %p60
        %p253 = pneg %p84
        %p254 = pneg %p81
        %p255 = pneg %p105
        %p256 = pneg %p102
        %p257 = pneg %p126
        %p258 = pneg %p123
        %p259 = pneg %p147
        %p260 = pneg %p144
        %p261 = pneg %p168
        %p262 = pneg %p165
        %p263 = pneg %p194
        %p264 = pneg %p191
        %s265 = sand.u32 %s181, 1
        %s266 = scalar_lea.sflag [#allocation3], %s265
        %s267 = sand.u32 %s181, 1
        %s268 = smul.addr %s267, 8
        %s269 = scalar_lea.vmem [#allocation2], %s268
        %p270 = scmp.lt.s32.totalorder %s21, 1
        %s271 = scalar_select %p270, %s21, 1
        %s272 = smul.addr %s271, 8
        %s273 = scalar_lea.vmem %s0, %s272
        %v274 = vld [vmem:[%s1] sm:$0xff]
        %s275 = scalar_lea.vmem %s1, 8
        %v276 = vld [vmem:[%s275] sm:$0xff]
        %s277 = scalar_lea.vmem %s1, 16
        %v278 = vld [vmem:[%s277] sm:$0xff]
        %v279 = vld [vmem:[%s6] sm:$0x1]
        %v280 = vld [vmem:[%s6 + $0x1] sm:$0x1]
        %v281 = vld [vmem:[%s6 + $0x2] sm:$0x1]
        %v282 = vld [vmem:[%s6 + $0x3] sm:$0x1]
        %v283 = vld [vmem:[%s273] sm:$0xff]
        %v284 = vadd.f32 %v283, %v274
        %v285 = vld [vmem:[%s2] sm:$0xff]
        %v286 = vld [vmem:[%s2 + $0x8] sm:$0xff]
        %v287 = vld [vmem:[%s2 + $0x10] sm:$0xff]
        %v288 = vld [vmem:[%s2 + $0x18] sm:$0xff]
        %v289 = vlaneseq
        %v290 = vshrl.u32 %v289, 7
        %v291 = vsub.s32 0, %v290
        %v292 = vrot.slane %v279, %v291
        %vm293 = vcmask 261120
        %v295 = vsel %vm293, %v284, 0
        %297 = vmatprep.subr.mxu0 0.0
        %298 = vmatpush1.msra.mxu0 %v285
        %299 = vmatprep.subr.mxu0 0.0
        %300 = vmatpush1.msra.mxu0 %v286
        %301 = vmatprep.subr.mxu0 0.0
        %302 = vmatpush1.msra.mxu0 %v287
        %303 = vmatprep.subr.mxu0 0.0
        %304 = vmatpush1.msra.mxu0 %v288
        %305 = vmatprep.subr.mxu0 0.0
        %306 = vmatpush1.msra.mxu0 0.0
        %307 = vmatprep.subr.mxu0 0.0
        %308 = vmatpush1.msra.mxu0 0.0
        %309 = vmatprep.subr.mxu0 0.0
        %310 = vmatpush1.msra.mxu0 0.0
        %311 = vmatprep.subr.mxu0 0.0
        %312 = vmatpush1.msra.mxu0 0.0
        %313 = vmatprep.subr.mxu0 0.0
        %314 = vmatpush1.msra.mxu0 0.0
        %315 = vmatprep.subr.mxu0 0.0
        %316 = vmatpush1.msra.mxu0 0.0
        %317 = vmatprep.subr.mxu0 0.0
        %318 = vmatpush1.msra.mxu0 0.0
        %319 = vmatprep.subr.mxu0 0.0
        %320 = vmatpush1.msra.mxu0 0.0
        %321 = vmatprep.subr.mxu0 0.0
        %322 = vmatpush1.msra.mxu0 0.0
        %323 = vmatprep.subr.mxu0 0.0
        %324 = vmatpush1.msra.mxu0 0.0
        %325 = vmatprep.subr.mxu0 0.0
        %326 = vmatpush1.msra.mxu0 0.0
        %327 = vmatprep.subr.mxu0 0.0
        %328 = vmatpush1.msra.mxu0 0.0
        %329 = vmatprep.subr.mxu0 0.0
        %330 = vmatpush1.msra.mxu0 0.0
        %331 = vmatprep.subr.mxu0 0.0
        %332 = vmatpush1.msra.mxu0 0.0
        %333 = vmatprep.subr.mxu0 0.0
        %334 = vmatpush1.msra.mxu0 0.0
        %335 = vmatprep.subr.mxu0 0.0
        %336 = vmatpush1.msra.mxu0 0.0
        %337 = vmatprep.subr.mxu0 0.0
        %338 = vmatpush1.msra.mxu0 0.0
        %339 = vmatprep.subr.mxu0 0.0
        %340 = vmatpush1.msra.mxu0 0.0
        %341 = vmatprep.subr.mxu0 0.0
        %342 = vmatpush1.msra.mxu0 0.0
        %343 = vmatprep.subr.mxu0 0.0
        %344 = vmatpush1.msra.mxu0 0.0
        %345 = vmatprep.subr.mxu0 0.0
        %346 = vmatpush1.msra.mxu0 0.0
        %347 = vmatprep.subr.mxu0 0.0
        %348 = vmatpush1.msra.mxu0 0.0
        %349 = vmatprep.subr.mxu0 0.0
        %350 = vmatpush1.msra.mxu0 0.0
        %351 = vmatprep.subr.mxu0 0.0
        %352 = vmatpush1.msra.mxu0 0.0
        %353 = vmatprep.subr.mxu0 0.0
        %354 = vmatpush1.msra.mxu0 0.0
        %355 = vmatprep.subr.mxu0 0.0
        %356 = vmatpush1.msra.mxu0 0.0
        %357 = vmatprep.subr.mxu0 0.0
        %358 = vmatpush1.msra.mxu0 0.0
        %359 = vmatprep.subr.mxu0 0.0
        %360 = vmatpush1.msra.mxu0 0.0
        %361 = vmatprep.mubr.f32.mxu0 0.0
        %362 = vmatmul.mubr.f32.gmra.mrb[0].mxu0 %v295
        %v363 = vpop.f32.mrb[0].mxu0
        %v364 = vadd.f32 %v292, %v363
        %v365 = vpop.f32.mrb[0].mxu0
        %366 = vdwg.mxu0
        %368 = vrot.lane.b32.xlu0 %v364, 120
        %v369 = vpop.permute.xlu0 %368
        %371 = vrot.lane.b32.xlu0 %v364, 112
        %v372 = vpop.permute.xlu0 %371
        %374 = vrot.lane.b32.xlu0 %v364, 104
        %v375 = vpop.permute.xlu0 %374
        %377 = vrot.lane.b32.xlu0 %v364, 96
        %v378 = vpop.permute.xlu0 %377
        %380 = vrot.lane.b32.xlu0 %v364, 88
        %v381 = vpop.permute.xlu0 %380
        %383 = vrot.lane.b32.xlu0 %v364, 80
        %v384 = vpop.permute.xlu0 %383
        %386 = vrot.lane.b32.xlu0 %v364, 72
        %v387 = vpop.permute.xlu0 %386
        %389 = vrot.lane.b32.xlu0 %v364, 64
        %v390 = vpop.permute.xlu0 %389
        %392 = vrot.lane.b32.xlu0 %v364, 56
        %v393 = vpop.permute.xlu0 %392
        %395 = vrot.lane.b32.xlu0 %v364, 48
        %v396 = vpop.permute.xlu0 %395
        %398 = vrot.lane.b32.xlu0 %v364, 40
        %v399 = vpop.permute.xlu0 %398
        %v401 = vcombine.low %v364, %v372
        %v402 = vcombine.high %v364, %v372
        %v404 = vunpack.c.l.s4 1983009808
        %v405 = vunpack.c.0.s8 %v404
        %v406 = vlaneseq
        %v407 = vshrl.u32 %v406, 7
        %v408 = vsub.s32 %v405, %v407
        %v409 = vrot.slane %v401, %v408
        %v411 = vunpack.c.l.s4 1983009808
        %v412 = vunpack.c.0.s8 %v411
        %v413 = vlaneseq
        %v414 = vshrl.u32 %v413, 7
        %v415 = vsub.s32 %v412, %v414
        %v416 = vrot.slane %v402, %v415
        %v417 = vcombine.low %v369, %v375
        %v418 = vcombine.high %v369, %v375
        %v420 = vunpack.c.l.s4 1983009808
        %v421 = vunpack.c.0.s8 %v420
        %v422 = vlaneseq
        %v423 = vshrl.u32 %v422, 7
        %v424 = vsub.s32 %v421, %v423
        %v425 = vrot.slane %v417, %v424
        %v427 = vunpack.c.l.s4 1983009808
        %v428 = vunpack.c.0.s8 %v427
        %v429 = vlaneseq
        %v430 = vshrl.u32 %v429, 7
        %v431 = vsub.s32 %v428, %v430
        %v432 = vrot.slane %v418, %v431
        %v433 = vcombine.low %v378, %v384
        %v434 = vcombine.high %v378, %v384
        %v436 = vunpack.c.l.s4 1983009808
        %v437 = vunpack.c.0.s8 %v436
        %v438 = vlaneseq
        %v439 = vshrl.u32 %v438, 7
        %v440 = vsub.s32 %v437, %v439
        %v441 = vrot.slane %v433, %v440
        %v443 = vunpack.c.l.s4 1983009808
        %v444 = vunpack.c.0.s8 %v443
        %v445 = vlaneseq
        %v446 = vshrl.u32 %v445, 7
        %v447 = vsub.s32 %v444, %v446
        %v448 = vrot.slane %v434, %v447
        %v449 = vcombine.low %v381, %v387
        %v450 = vcombine.high %v381, %v387
        %v452 = vunpack.c.l.s4 1983009808
        %v453 = vunpack.c.0.s8 %v452
        %v454 = vlaneseq
        %v455 = vshrl.u32 %v454, 7
        %v456 = vsub.s32 %v453, %v455
        %v457 = vrot.slane %v449, %v456
        %v459 = vunpack.c.l.s4 1983009808
        %v460 = vunpack.c.0.s8 %v459
        %v461 = vlaneseq
        %v462 = vshrl.u32 %v461, 7
        %v463 = vsub.s32 %v460, %v462
        %v464 = vrot.slane %v450, %v463
        %v465 = vcombine.low %v409, %v425
        %v466 = vcombine.high %v409, %v425
        %v468 = vunpack.c.l.s4 1934713408
        %v469 = vunpack.c.0.s8 %v468
        %v470 = vlaneseq
        %v471 = vshrl.u32 %v470, 7
        %v472 = vsub.s32 %v469, %v471
        %v473 = vrot.slane %v465, %v472
        %v475 = vunpack.c.l.s4 1934713408
        %v476 = vunpack.c.0.s8 %v475
        %v477 = vlaneseq
        %v478 = vshrl.u32 %v477, 7
        %v479 = vsub.s32 %v476, %v478
        %v480 = vrot.slane %v466, %v479
        %v481 = vcombine.low %v416, %v432
        %v482 = vcombine.high %v416, %v432
        %v484 = vunpack.c.l.s4 1934713408
        %v485 = vunpack.c.0.s8 %v484
        %v486 = vlaneseq
        %v487 = vshrl.u32 %v486, 7
        %v488 = vsub.s32 %v485, %v487
        %v489 = vrot.slane %v481, %v488
        %v491 = vunpack.c.l.s4 1934713408
        %v492 = vunpack.c.0.s8 %v491
        %v493 = vlaneseq
        %v494 = vshrl.u32 %v493, 7
        %v495 = vsub.s32 %v492, %v494
        %v496 = vrot.slane %v482, %v495
        %v497 = vcombine.low %v441, %v457
        %v498 = vcombine.high %v441, %v457
        %v500 = vunpack.c.l.s4 1934713408
        %v501 = vunpack.c.0.s8 %v500
        %v502 = vlaneseq
        %v503 = vshrl.u32 %v502, 7
        %v504 = vsub.s32 %v501, %v503
        %v505 = vrot.slane %v497, %v504
        %v507 = vunpack.c.l.s4 1934713408
        %v508 = vunpack.c.0.s8 %v507
        %v509 = vlaneseq
        %v510 = vshrl.u32 %v509, 7
        %v511 = vsub.s32 %v508, %v510
        %v512 = vrot.slane %v498, %v511
        %v513 = vcombine.low %v448, %v464
        %v514 = vcombine.high %v448, %v464
        %v516 = vunpack.c.l.s4 1934713408
        %v517 = vunpack.c.0.s8 %v516
        %v518 = vlaneseq
        %v519 = vshrl.u32 %v518, 7
        %v520 = vsub.s32 %v517, %v519
        %v521 = vrot.slane %v513, %v520
        %v523 = vunpack.c.l.s4 1934713408
        %v524 = vunpack.c.0.s8 %v523
        %v525 = vlaneseq
        %v526 = vshrl.u32 %v525, 7
        %v527 = vsub.s32 %v524, %v526
        %v528 = vrot.slane %v514, %v527
        %v529 = vcombine.low %v473, %v505
        %v530 = vcombine.high %v473, %v505
        %v531 = vcombine.low %v480, %v512
        %v532 = vcombine.high %v480, %v512
        %v533 = vcombine.low %v489, %v521
        %v534 = vcombine.high %v489, %v521
        %v535 = vcombine.low %v496, %v528
        %v536 = vcombine.high %v496, %v528
        %v537 = vcombine.low %v390, %v396
        %v538 = vcombine.high %v390, %v396
        %v540 = vunpack.c.l.s4 1983009808
        %v541 = vunpack.c.0.s8 %v540
        %v542 = vlaneseq
        %v543 = vshrl.u32 %v542, 7
        %v544 = vsub.s32 %v541, %v543
        %v545 = vrot.slane %v537, %v544
        %v547 = vunpack.c.l.s4 1983009808
        %v548 = vunpack.c.0.s8 %v547
        %v549 = vlaneseq
        %v550 = vshrl.u32 %v549, 7
        %v551 = vsub.s32 %v548, %v550
        %v552 = vrot.slane %v538, %v551
        %v553 = vcombine.low %v393, %v399
        %v554 = vcombine.high %v393, %v399
        %v556 = vunpack.c.l.s4 1983009808
        %v557 = vunpack.c.0.s8 %v556
        %v558 = vlaneseq
        %v559 = vshrl.u32 %v558, 7
        %v560 = vsub.s32 %v557, %v559
        %v561 = vrot.slane %v553, %v560
        %v563 = vunpack.c.l.s4 1983009808
        %v564 = vunpack.c.0.s8 %v563
        %v565 = vlaneseq
        %v566 = vshrl.u32 %v565, 7
        %v567 = vsub.s32 %v564, %v566
        %v568 = vrot.slane %v554, %v567
        %v569 = vcombine.low %v545, %v561
        %v570 = vcombine.high %v545, %v561
        %v572 = vunpack.c.l.s4 1934713408
        %v573 = vunpack.c.0.s8 %v572
        %v574 = vlaneseq
        %v575 = vshrl.u32 %v574, 7
        %v576 = vsub.s32 %v573, %v575
        %v577 = vrot.slane %v569, %v576
        %v579 = vunpack.c.l.s4 1934713408
        %v580 = vunpack.c.0.s8 %v579
        %v581 = vlaneseq
        %v582 = vshrl.u32 %v581, 7
        %v583 = vsub.s32 %v580, %v582
        %v584 = vrot.slane %v570, %v583
        %v585 = vcombine.low %v552, %v568
        %v586 = vcombine.high %v552, %v568
        %v588 = vunpack.c.l.s4 1934713408
        %v589 = vunpack.c.0.s8 %v588
        %v590 = vlaneseq
        %v591 = vshrl.u32 %v590, 7
        %v592 = vsub.s32 %v589, %v591
        %v593 = vrot.slane %v585, %v592
        %v595 = vunpack.c.l.s4 1934713408
        %v596 = vunpack.c.0.s8 %v595
        %v597 = vlaneseq
        %v598 = vshrl.u32 %v597, 7
        %v599 = vsub.s32 %v596, %v598
        %v600 = vrot.slane %v586, %v599
        %v601 = vcombine.high %v577, 0.0
        %v602 = vcombine.high %v584, 0.0
        %v603 = vcombine.high %v593, 0.0
        %v604 = vcombine.high %v600, 0.0
        %v605 = vcombine.low %v529, %v531
        %v606 = vcombine.high %v529, %v531
        %v608 = vunpack.c.l.s4 1983009808
        %v609 = vunpack.c.0.s8 %v608
        %v610 = vlaneseq
        %v611 = vshrl.u32 %v610, 7
        %v612 = vsub.s32 %v609, %v611
        %v613 = vrot.slane %v605, %v612
        %v615 = vunpack.c.l.s4 1983009808
        %v616 = vunpack.c.0.s8 %v615
        %v617 = vlaneseq
        %v618 = vshrl.u32 %v617, 7
        %v619 = vsub.s32 %v616, %v618
        %v620 = vrot.slane %v606, %v619
        %v621 = vcombine.low %v530, %v532
        %v622 = vcombine.high %v530, %v532
        %v624 = vunpack.c.l.s4 1983009808
        %v625 = vunpack.c.0.s8 %v624
        %v626 = vlaneseq
        %v627 = vshrl.u32 %v626, 7
        %v628 = vsub.s32 %v625, %v627
        %v629 = vrot.slane %v621, %v628
        %v631 = vunpack.c.l.s4 1983009808
        %v632 = vunpack.c.0.s8 %v631
        %v633 = vlaneseq
        %v634 = vshrl.u32 %v633, 7
        %v635 = vsub.s32 %v632, %v634
        %v636 = vrot.slane %v622, %v635
        %v637 = vcombine.low %v533, %v535
        %v638 = vcombine.high %v533, %v535
        %v640 = vunpack.c.l.s4 1983009808
        %v641 = vunpack.c.0.s8 %v640
        %v642 = vlaneseq
        %v643 = vshrl.u32 %v642, 7
        %v644 = vsub.s32 %v641, %v643
        %v645 = vrot.slane %v637, %v644
        %v647 = vunpack.c.l.s4 1983009808
        %v648 = vunpack.c.0.s8 %v647
        %v649 = vlaneseq
        %v650 = vshrl.u32 %v649, 7
        %v651 = vsub.s32 %v648, %v650
        %v652 = vrot.slane %v638, %v651
        %v653 = vcombine.low %v534, %v536
        %v654 = vcombine.high %v534, %v536
        %v656 = vunpack.c.l.s4 1983009808
        %v657 = vunpack.c.0.s8 %v656
        %v658 = vlaneseq
        %v659 = vshrl.u32 %v658, 7
        %v660 = vsub.s32 %v657, %v659
        %v661 = vrot.slane %v653, %v660
        %v663 = vunpack.c.l.s4 1983009808
        %v664 = vunpack.c.0.s8 %v663
        %v665 = vlaneseq
        %v666 = vshrl.u32 %v665, 7
        %v667 = vsub.s32 %v664, %v666
        %v668 = vrot.slane %v654, %v667
        %v669 = vcombine.low %v613, %v629
        %v670 = vcombine.high %v613, %v629
        %v672 = vunpack.c.l.s4 1934713408
        %v673 = vunpack.c.0.s8 %v672
        %v674 = vlaneseq
        %v675 = vshrl.u32 %v674, 7
        %v676 = vsub.s32 %v673, %v675
        %v677 = vrot.slane %v669, %v676
        %v679 = vunpack.c.l.s4 1934713408
        %v680 = vunpack.c.0.s8 %v679
        %v681 = vlaneseq
        %v682 = vshrl.u32 %v681, 7
        %v683 = vsub.s32 %v680, %v682
        %v684 = vrot.slane %v670, %v683
        %v685 = vcombine.low %v620, %v636
        %v686 = vcombine.high %v620, %v636
        %v688 = vunpack.c.l.s4 1934713408
        %v689 = vunpack.c.0.s8 %v688
        %v690 = vlaneseq
        %v691 = vshrl.u32 %v690, 7
        %v692 = vsub.s32 %v689, %v691
        %v693 = vrot.slane %v685, %v692
        %v695 = vunpack.c.l.s4 1934713408
        %v696 = vunpack.c.0.s8 %v695
        %v697 = vlaneseq
        %v698 = vshrl.u32 %v697, 7
        %v699 = vsub.s32 %v696, %v698
        %v700 = vrot.slane %v686, %v699
        %v701 = vcombine.low %v645, %v661
        %v702 = vcombine.high %v645, %v661
        %v704 = vunpack.c.l.s4 1934713408
        %v705 = vunpack.c.0.s8 %v704
        %v706 = vlaneseq
        %v707 = vshrl.u32 %v706, 7
        %v708 = vsub.s32 %v705, %v707
        %v709 = vrot.slane %v701, %v708
        %v711 = vunpack.c.l.s4 1934713408
        %v712 = vunpack.c.0.s8 %v711
        %v713 = vlaneseq
        %v714 = vshrl.u32 %v713, 7
        %v715 = vsub.s32 %v712, %v714
        %v716 = vrot.slane %v702, %v715
        %v717 = vcombine.low %v652, %v668
        %v718 = vcombine.high %v652, %v668
        %v720 = vunpack.c.l.s4 1934713408
        %v721 = vunpack.c.0.s8 %v720
        %v722 = vlaneseq
        %v723 = vshrl.u32 %v722, 7
        %v724 = vsub.s32 %v721, %v723
        %v725 = vrot.slane %v717, %v724
        %v727 = vunpack.c.l.s4 1934713408
        %v728 = vunpack.c.0.s8 %v727
        %v729 = vlaneseq
        %v730 = vshrl.u32 %v729, 7
        %v731 = vsub.s32 %v728, %v730
        %v732 = vrot.slane %v718, %v731
        %v733 = vcombine.low %v677, %v709
        %v734 = vcombine.high %v677, %v709
        %v735 = vcombine.low %v684, %v716
        %v736 = vcombine.high %v684, %v716
        %v737 = vcombine.low %v693, %v725
        %v738 = vcombine.high %v693, %v725
        %v739 = vcombine.low %v700, %v732
        %v740 = vcombine.high %v700, %v732
        %v741 = vcombine.low %v577, %v584
        %v743 = vunpack.c.l.s4 1983009808
        %v744 = vunpack.c.0.s8 %v743
        %v745 = vlaneseq
        %v746 = vshrl.u32 %v745, 7
        %v747 = vsub.s32 %v744, %v746
        %v748 = vrot.slane %v741, %v747
        %v749 = vcombine.low %v601, %v602
        %v751 = vunpack.c.l.s4 1983009808
        %v752 = vunpack.c.0.s8 %v751
        %v753 = vlaneseq
        %v754 = vshrl.u32 %v753, 7
        %v755 = vsub.s32 %v752, %v754
        %v756 = vrot.slane %v749, %v755
        %v757 = vcombine.low %v593, %v600
        %v759 = vunpack.c.l.s4 1983009808
        %v760 = vunpack.c.0.s8 %v759
        %v761 = vlaneseq
        %v762 = vshrl.u32 %v761, 7
        %v763 = vsub.s32 %v760, %v762
        %v764 = vrot.slane %v757, %v763
        %v765 = vcombine.low %v603, %v604
        %v767 = vunpack.c.l.s4 1983009808
        %v768 = vunpack.c.0.s8 %v767
        %v769 = vlaneseq
        %v770 = vshrl.u32 %v769, 7
        %v771 = vsub.s32 %v768, %v770
        %v772 = vrot.slane %v765, %v771
        %v773 = vcombine.low %v748, %v756
        %v774 = vcombine.high %v748, %v756
        %v776 = vunpack.c.l.s4 1934713408
        %v777 = vunpack.c.0.s8 %v776
        %v778 = vlaneseq
        %v779 = vshrl.u32 %v778, 7
        %v780 = vsub.s32 %v777, %v779
        %v781 = vrot.slane %v773, %v780
        %v783 = vunpack.c.l.s4 1934713408
        %v784 = vunpack.c.0.s8 %v783
        %v785 = vlaneseq
        %v786 = vshrl.u32 %v785, 7
        %v787 = vsub.s32 %v784, %v786
        %v788 = vrot.slane %v774, %v787
        %v789 = vcombine.low %v764, %v772
        %v790 = vcombine.high %v764, %v772
        %v792 = vunpack.c.l.s4 1934713408
        %v793 = vunpack.c.0.s8 %v792
        %v794 = vlaneseq
        %v795 = vshrl.u32 %v794, 7
        %v796 = vsub.s32 %v793, %v795
        %v797 = vrot.slane %v789, %v796
        %v799 = vunpack.c.l.s4 1934713408
        %v800 = vunpack.c.0.s8 %v799
        %v801 = vlaneseq
        %v802 = vshrl.u32 %v801, 7
        %v803 = vsub.s32 %v800, %v802
        %v804 = vrot.slane %v790, %v803
        %v805 = vcombine.low %v781, %v797
        %v806 = vcombine.high %v781, %v797
        %v807 = vcombine.low %v788, %v804
        %v808 = vcombine.high %v788, %v804
        %vm809 = vcmask 64512
        %v811 = vsel %vm809, %v733, 0
        %v814 = vsel %vm809, %v737, 0
        %816 = vmatprep.subr.mxu0 0.0
        %817 = vmatpush1.xpose.msra.mxu0 %v814
        %818 = vmatprep.subr.mxu0 0.0
        %819 = vmatpush1.xpose.msra.mxu0 0.0
        %820 = vmatprep.subr.mxu0 0.0
        %821 = vmatpush1.xpose.msra.mxu0 0.0
        %822 = vmatprep.subr.mxu0 0.0
        %823 = vmatpush1.xpose.msra.mxu0 0.0
        %824 = vmatprep.subr.mxu0 0.0
        %825 = vmatpush1.xpose.msra.mxu0 0.0
        %826 = vmatprep.subr.mxu0 0.0
        %827 = vmatpush1.xpose.msra.mxu0 0.0
        %828 = vmatprep.subr.mxu0 0.0
        %829 = vmatpush1.xpose.msra.mxu0 0.0
        %830 = vmatprep.subr.mxu0 0.0
        %831 = vmatpush1.xpose.msra.mxu0 0.0
        %832 = vmatprep.subr.mxu0 0.0
        %833 = vmatpush1.xpose.msra.mxu0 0.0
        %834 = vmatprep.subr.mxu0 0.0
        %835 = vmatpush1.xpose.msra.mxu0 0.0
        %836 = vmatprep.subr.mxu0 0.0
        %837 = vmatpush1.xpose.msra.mxu0 0.0
        %838 = vmatprep.subr.mxu0 0.0
        %839 = vmatpush1.xpose.msra.mxu0 0.0
        %840 = vmatprep.subr.mxu0 0.0
        %841 = vmatpush1.xpose.msra.mxu0 0.0
        %842 = vmatprep.subr.mxu0 0.0
        %843 = vmatpush1.xpose.msra.mxu0 0.0
        %844 = vmatprep.subr.mxu0 0.0
        %845 = vmatpush1.xpose.msra.mxu0 0.0
        %846 = vmatprep.subr.mxu0 0.0
        %847 = vmatpush1.xpose.msra.mxu0 0.0
        %848 = vmatprep.subr.mxu0 0.0
        %849 = vmatpush1.xpose.msra.mxu0 0.0
        %850 = vmatprep.subr.mxu0 0.0
        %851 = vmatpush1.xpose.msra.mxu0 0.0
        %852 = vmatprep.subr.mxu0 0.0
        %853 = vmatpush1.xpose.msra.mxu0 0.0
        %854 = vmatprep.subr.mxu0 0.0
        %855 = vmatpush1.xpose.msra.mxu0 0.0
        %856 = vmatprep.subr.mxu0 0.0
        %857 = vmatpush1.xpose.msra.mxu0 0.0
        %858 = vmatprep.subr.mxu0 0.0
        %859 = vmatpush1.xpose.msra.mxu0 0.0
        %860 = vmatprep.subr.mxu0 0.0
        %861 = vmatpush1.xpose.msra.mxu0 0.0
        %862 = vmatprep.subr.mxu0 0.0
        %863 = vmatpush1.xpose.msra.mxu0 0.0
        %864 = vmatprep.subr.mxu0 0.0
        %865 = vmatpush1.xpose.msra.mxu0 0.0
        %866 = vmatprep.subr.mxu0 0.0
        %867 = vmatpush1.xpose.msra.mxu0 0.0
        %868 = vmatprep.subr.mxu0 0.0
        %869 = vmatpush1.xpose.msra.mxu0 0.0
        %870 = vmatprep.subr.mxu0 0.0
        %871 = vmatpush1.xpose.msra.mxu0 0.0
        %872 = vmatprep.subr.mxu0 0.0
        %873 = vmatpush1.xpose.msra.mxu0 0.0
        %874 = vmatprep.subr.mxu0 0.0
        %875 = vmatpush1.xpose.msra.mxu0 0.0
        %876 = vmatprep.subr.mxu0 0.0
        %877 = vmatpush1.xpose.msra.mxu0 0.0
        %878 = vmatprep.subr.mxu0 0.0
        %879 = vmatpush1.xpose.msra.mxu0 0.0
        %880 = vmatprep.mubr.f32.mxu0 0.0
        %881 = vmatmul.mubr.f32.gmra.mrb[0].mxu0 %v811
        %v882 = vpop.f32.mrb[0].mxu0
        %v883 = vadd.f32 0.0, %v882
        %v884 = vpop.f32.mrb[0].mxu0
        %885 = vdwg.mxu0
        %v887 = vsel %vm809, %v734, 0
        %v890 = vsel %vm809, %v738, 0
        %892 = vmatprep.subr.mxu0 0.0
        %893 = vmatpush1.xpose.msra.mxu0 %v890
        %894 = vmatprep.subr.mxu0 0.0
        %895 = vmatpush1.xpose.msra.mxu0 0.0
        %896 = vmatprep.subr.mxu0 0.0
        %897 = vmatpush1.xpose.msra.mxu0 0.0
        %898 = vmatprep.subr.mxu0 0.0
        %899 = vmatpush1.xpose.msra.mxu0 0.0
        %900 = vmatprep.subr.mxu0 0.0
        %901 = vmatpush1.xpose.msra.mxu0 0.0
        %902 = vmatprep.subr.mxu0 0.0
        %903 = vmatpush1.xpose.msra.mxu0 0.0
        %904 = vmatprep.subr.mxu0 0.0
        %905 = vmatpush1.xpose.msra.mxu0 0.0
        %906 = vmatprep.subr.mxu0 0.0
        %907 = vmatpush1.xpose.msra.mxu0 0.0
        %908 = vmatprep.subr.mxu0 0.0
        %909 = vmatpush1.xpose.msra.mxu0 0.0
        %910 = vmatprep.subr.mxu0 0.0
        %911 = vmatpush1.xpose.msra.mxu0 0.0
        %912 = vmatprep.subr.mxu0 0.0
        %913 = vmatpush1.xpose.msra.mxu0 0.0
        %914 = vmatprep.subr.mxu0 0.0
        %915 = vmatpush1.xpose.msra.mxu0 0.0
        %916 = vmatprep.subr.mxu0 0.0
        %917 = vmatpush1.xpose.msra.mxu0 0.0
        %918 = vmatprep.subr.mxu0 0.0
        %919 = vmatpush1.xpose.msra.mxu0 0.0
        %920 = vmatprep.subr.mxu0 0.0
        %921 = vmatpush1.xpose.msra.mxu0 0.0
        %922 = vmatprep.subr.mxu0 0.0
        %923 = vmatpush1.xpose.msra.mxu0 0.0
        %924 = vmatprep.subr.mxu0 0.0
        %925 = vmatpush1.xpose.msra.mxu0 0.0
        %926 = vmatprep.subr.mxu0 0.0
        %927 = vmatpush1.xpose.msra.mxu0 0.0
        %928 = vmatprep.subr.mxu0 0.0
        %929 = vmatpush1.xpose.msra.mxu0 0.0
        %930 = vmatprep.subr.mxu0 0.0
        %931 = vmatpush1.xpose.msra.mxu0 0.0
        %932 = vmatprep.subr.mxu0 0.0
        %933 = vmatpush1.xpose.msra.mxu0 0.0
        %934 = vmatprep.subr.mxu0 0.0
        %935 = vmatpush1.xpose.msra.mxu0 0.0
        %936 = vmatprep.subr.mxu0 0.0
        %937 = vmatpush1.xpose.msra.mxu0 0.0
        %938 = vmatprep.subr.mxu0 0.0
        %939 = vmatpush1.xpose.msra.mxu0 0.0
        %940 = vmatprep.subr.mxu0 0.0
        %941 = vmatpush1.xpose.msra.mxu0 0.0
        %942 = vmatprep.subr.mxu0 0.0
        %943 = vmatpush1.xpose.msra.mxu0 0.0
        %944 = vmatprep.subr.mxu0 0.0
        %945 = vmatpush1.xpose.msra.mxu0 0.0
        %946 = vmatprep.subr.mxu0 0.0
        %947 = vmatpush1.xpose.msra.mxu0 0.0
        %948 = vmatprep.subr.mxu0 0.0
        %949 = vmatpush1.xpose.msra.mxu0 0.0
        %950 = vmatprep.subr.mxu0 0.0
        %951 = vmatpush1.xpose.msra.mxu0 0.0
        %952 = vmatprep.subr.mxu0 0.0
        %953 = vmatpush1.xpose.msra.mxu0 0.0
        %954 = vmatprep.subr.mxu0 0.0
        %955 = vmatpush1.xpose.msra.mxu0 0.0
        %956 = vmatprep.mubr.f32.mxu0 0.0
        %957 = vmatmul.mubr.f32.gmra.mrb[0].mxu0 %v887
        %v958 = vpop.f32.mrb[0].mxu0
        %v959 = vadd.f32 0.0, %v958
        %v960 = vpop.f32.mrb[0].mxu0
        %961 = vdwg.mxu0
        %v963 = vsel %vm809, %v735, 0
        %v966 = vsel %vm809, %v739, 0
        %968 = vmatprep.subr.mxu0 0.0
        %969 = vmatpush1.xpose.msra.mxu0 %v966
        %970 = vmatprep.subr.mxu0 0.0
        %971 = vmatpush1.xpose.msra.mxu0 0.0
        %972 = vmatprep.subr.mxu0 0.0
        %973 = vmatpush1.xpose.msra.mxu0 0.0
        %974 = vmatprep.subr.mxu0 0.0
        %975 = vmatpush1.xpose.msra.mxu0 0.0
        %976 = vmatprep.subr.mxu0 0.0
        %977 = vmatpush1.xpose.msra.mxu0 0.0
        %978 = vmatprep.subr.mxu0 0.0
        %979 = vmatpush1.xpose.msra.mxu0 0.0
        %980 = vmatprep.subr.mxu0 0.0
        %981 = vmatpush1.xpose.msra.mxu0 0.0
        %982 = vmatprep.subr.mxu0 0.0
        %983 = vmatpush1.xpose.msra.mxu0 0.0
        %984 = vmatprep.subr.mxu0 0.0
        %985 = vmatpush1.xpose.msra.mxu0 0.0
        %986 = vmatprep.subr.mxu0 0.0
        %987 = vmatpush1.xpose.msra.mxu0 0.0
        %988 = vmatprep.subr.mxu0 0.0
        %989 = vmatpush1.xpose.msra.mxu0 0.0
        %990 = vmatprep.subr.mxu0 0.0
        %991 = vmatpush1.xpose.msra.mxu0 0.0
        %992 = vmatprep.subr.mxu0 0.0
        %993 = vmatpush1.xpose.msra.mxu0 0.0
        %994 = vmatprep.subr.mxu0 0.0
        %995 = vmatpush1.xpose.msra.mxu0 0.0
        %996 = vmatprep.subr.mxu0 0.0
        %997 = vmatpush1.xpose.msra.mxu0 0.0
        %998 = vmatprep.subr.mxu0 0.0
        %999 = vmatpush1.xpose.msra.mxu0 0.0
        %1000 = vmatprep.subr.mxu0 0.0
        %1001 = vmatpush1.xpose.msra.mxu0 0.0
        %1002 = vmatprep.subr.mxu0 0.0
        %1003 = vmatpush1.xpose.msra.mxu0 0.0
        %1004 = vmatprep.subr.mxu0 0.0
        %1005 = vmatpush1.xpose.msra.mxu0 0.0
        %1006 = vmatprep.subr.mxu0 0.0
        %1007 = vmatpush1.xpose.msra.mxu0 0.0
        %1008 = vmatprep.subr.mxu0 0.0
        %1009 = vmatpush1.xpose.msra.mxu0 0.0
        %1010 = vmatprep.subr.mxu0 0.0
        %1011 = vmatpush1.xpose.msra.mxu0 0.0
        %1012 = vmatprep.subr.mxu0 0.0
        %1013 = vmatpush1.xpose.msra.mxu0 0.0
        %1014 = vmatprep.subr.mxu0 0.0
        %1015 = vmatpush1.xpose.msra.mxu0 0.0
        %1016 = vmatprep.subr.mxu0 0.0
        %1017 = vmatpush1.xpose.msra.mxu0 0.0
        %1018 = vmatprep.subr.mxu0 0.0
        %1019 = vmatpush1.xpose.msra.mxu0 0.0
        %1020 = vmatprep.subr.mxu0 0.0
        %1021 = vmatpush1.xpose.msra.mxu0 0.0
        %1022 = vmatprep.subr.mxu0 0.0
        %1023 = vmatpush1.xpose.msra.mxu0 0.0
        %1024 = vmatprep.subr.mxu0 0.0
        %1025 = vmatpush1.xpose.msra.mxu0 0.0
        %1026 = vmatprep.subr.mxu0 0.0
        %1027 = vmatpush1.xpose.msra.mxu0 0.0
        %1028 = vmatprep.subr.mxu0 0.0
        %1029 = vmatpush1.xpose.msra.mxu0 0.0
        %1030 = vmatprep.subr.mxu0 0.0
        %1031 = vmatpush1.xpose.msra.mxu0 0.0
        %1032 = vmatprep.mubr.f32.mxu0 0.0
        %1033 = vmatmul.mubr.f32.gmra.mrb[0].mxu0 %v963
        %v1034 = vpop.f32.mrb[0].mxu0
        %v1035 = vadd.f32 0.0, %v1034
        %v1036 = vpop.f32.mrb[0].mxu0
        %1037 = vdwg.mxu0
        %v1039 = vsel %vm809, %v736, 0
        %v1042 = vsel %vm809, %v740, 0
        %1044 = vmatprep.subr.mxu0 0.0
        %1045 = vmatpush1.xpose.msra.mxu0 %v1042
        %1046 = vmatprep.subr.mxu0 0.0
        %1047 = vmatpush1.xpose.msra.mxu0 0.0
        %1048 = vmatprep.subr.mxu0 0.0
        %1049 = vmatpush1.xpose.msra.mxu0 0.0
        %1050 = vmatprep.subr.mxu0 0.0
        %1051 = vmatpush1.xpose.msra.mxu0 0.0
        %1052 = vmatprep.subr.mxu0 0.0
        %1053 = vmatpush1.xpose.msra.mxu0 0.0
        %1054 = vmatprep.subr.mxu0 0.0
        %1055 = vmatpush1.xpose.msra.mxu0 0.0
        %1056 = vmatprep.subr.mxu0 0.0
        %1057 = vmatpush1.xpose.msra.mxu0 0.0
        %1058 = vmatprep.subr.mxu0 0.0
        %1059 = vmatpush1.xpose.msra.mxu0 0.0
        %1060 = vmatprep.subr.mxu0 0.0
        %1061 = vmatpush1.xpose.msra.mxu0 0.0
        %1062 = vmatprep.subr.mxu0 0.0
        %1063 = vmatpush1.xpose.msra.mxu0 0.0
        %1064 = vmatprep.subr.mxu0 0.0
        %1065 = vmatpush1.xpose.msra.mxu0 0.0
        %1066 = vmatprep.subr.mxu0 0.0
        %1067 = vmatpush1.xpose.msra.mxu0 0.0
        %1068 = vmatprep.subr.mxu0 0.0
        %1069 = vmatpush1.xpose.msra.mxu0 0.0
        %1070 = vmatprep.subr.mxu0 0.0
        %1071 = vmatpush1.xpose.msra.mxu0 0.0
        %1072 = vmatprep.subr.mxu0 0.0
        %1073 = vmatpush1.xpose.msra.mxu0 0.0
        %1074 = vmatprep.subr.mxu0 0.0
        %1075 = vmatpush1.xpose.msra.mxu0 0.0
        %1076 = vmatprep.subr.mxu0 0.0
        %1077 = vmatpush1.xpose.msra.mxu0 0.0
        %1078 = vmatprep.subr.mxu0 0.0
        %1079 = vmatpush1.xpose.msra.mxu0 0.0
        %1080 = vmatprep.subr.mxu0 0.0
        %1081 = vmatpush1.xpose.msra.mxu0 0.0
        %1082 = vmatprep.subr.mxu0 0.0
        %1083 = vmatpush1.xpose.msra.mxu0 0.0
        %1084 = vmatprep.subr.mxu0 0.0
        %1085 = vmatpush1.xpose.msra.mxu0 0.0
        %1086 = vmatprep.subr.mxu0 0.0
        %1087 = vmatpush1.xpose.msra.mxu0 0.0
        %1088 = vmatprep.subr.mxu0 0.0
        %1089 = vmatpush1.xpose.msra.mxu0 0.0
        %1090 = vmatprep.subr.mxu0 0.0
        %1091 = vmatpush1.xpose.msra.mxu0 0.0
        %1092 = vmatprep.subr.mxu0 0.0
        %1093 = vmatpush1.xpose.msra.mxu0 0.0
        %1094 = vmatprep.subr.mxu0 0.0
        %1095 = vmatpush1.xpose.msra.mxu0 0.0
        %1096 = vmatprep.subr.mxu0 0.0
        %1097 = vmatpush1.xpose.msra.mxu0 0.0
        %1098 = vmatprep.subr.mxu0 0.0
        %1099 = vmatpush1.xpose.msra.mxu0 0.0
        %1100 = vmatprep.subr.mxu0 0.0
        %1101 = vmatpush1.xpose.msra.mxu0 0.0
        %1102 = vmatprep.subr.mxu0 0.0
        %1103 = vmatpush1.xpose.msra.mxu0 0.0
        %1104 = vmatprep.subr.mxu0 0.0
        %1105 = vmatpush1.xpose.msra.mxu0 0.0
        %1106 = vmatprep.subr.mxu0 0.0
        %1107 = vmatpush1.xpose.msra.mxu0 0.0
        %1108 = vmatprep.mubr.f32.mxu0 0.0
        %1109 = vmatmul.mubr.f32.gmra.mrb[0].mxu0 %v1039
        %v1110 = vpop.f32.mrb[0].mxu0
        %v1111 = vadd.f32 0.0, %v1110
        %v1112 = vpop.f32.mrb[0].mxu0
        %1113 = vdwg.mxu0
        %v1114 = vsel %vm809, %v883, -inf
        %1115 = vmax.xlane.f32.xlu0 %v1114
        %v1116 = vpop.xlane.xlu0 %1115
        %v1117 = vsel %vm809, %v959, -inf
        %1118 = vmax.xlane.f32.xlu0 %v1117
        %v1119 = vpop.xlane.xlu0 %1118
        %v1120 = vsel %vm809, %v1035, -inf
        %1121 = vmax.xlane.f32.xlu0 %v1120
        %v1122 = vpop.xlane.xlu0 %1121
        %v1123 = vsel %vm809, %v1111, -inf
        %1124 = vmax.xlane.f32.xlu0 %v1123
        %v1125 = vpop.xlane.xlu0 %1124
        %v1126 = vsub.f32 %v883, %v1116
        %v1127 = vsub.f32 %v959, %v1119
        %v1128 = vsub.f32 %v1035, %v1122
        %v1129 = vsub.f32 %v1111, %v1125
        %v1130 = vmul.f32 %v1126, 1.442695
        %v1131 = vpow.pop %v1130
        %v1132 = vmul.f32 %v1127, 1.442695
        %v1133 = vpow.pop %v1132
        %v1134 = vmul.f32 %v1128, 1.442695
        %v1135 = vpow.pop %v1134
        %v1136 = vmul.f32 %v1129, 1.442695
        %v1137 = vpow.pop %v1136
        %v1138 = vsel %vm809, %v1131, 0.0
        %1139 = vadd.xlane.f32.xlu0 %v1138
        %v1140 = vpop.xlane.xlu0 %1139
        %v1141 = vsel %vm809, %v1133, 0.0
        %1142 = vadd.xlane.f32.xlu0 %v1141
        %v1143 = vpop.xlane.xlu0 %1142
        %v1144 = vsel %vm809, %v1135, 0.0
        %1145 = vadd.xlane.f32.xlu0 %v1144
        %v1146 = vpop.xlane.xlu0 %1145
        %v1147 = vsel %vm809, %v1137, 0.0
        %1148 = vadd.xlane.f32.xlu0 %v1147
        %v1149 = vpop.xlane.xlu0 %1148
        %v1150 = vrcp.pop %v1140
        %v1151 = vrcp.pop %v1143
        %v1152 = vrcp.pop %v1146
        %v1153 = vrcp.pop %v1149
        %v1154 = vmul.f32 %v1131, %v1150
        %v1155 = vmul.f32 %v1133, %v1151
        %v1156 = vmul.f32 %v1135, %v1152
        %v1157 = vmul.f32 %v1137, %v1153
        %v1159 = vsel %vm809, %v1154, 0
        %1161 = vmatprep.subr.mxu0 0.0
        %1162 = vmatpush1.msra.mxu0 %v805
        %1163 = vmatprep.subr.mxu0 0.0
        %1164 = vmatpush1.msra.mxu0 0.0
        %1165 = vmatprep.subr.mxu0 0.0
        %1166 = vmatpush1.msra.mxu0 0.0
        %1167 = vmatprep.subr.mxu0 0.0
        %1168 = vmatpush1.msra.mxu0 0.0
        %1169 = vmatprep.subr.mxu0 0.0
        %1170 = vmatpush1.msra.mxu0 0.0
        %1171 = vmatprep.subr.mxu0 0.0
        %1172 = vmatpush1.msra.mxu0 0.0
        %1173 = vmatprep.subr.mxu0 0.0
        %1174 = vmatpush1.msra.mxu0 0.0
        %1175 = vmatprep.subr.mxu0 0.0
        %1176 = vmatpush1.msra.mxu0 0.0
        %1177 = vmatprep.subr.mxu0 0.0
        %1178 = vmatpush1.msra.mxu0 0.0
        %1179 = vmatprep.subr.mxu0 0.0
        %1180 = vmatpush1.msra.mxu0 0.0
        %1181 = vmatprep.subr.mxu0 0.0
        %1182 = vmatpush1.msra.mxu0 0.0
        %1183 = vmatprep.subr.mxu0 0.0
        %1184 = vmatpush1.msra.mxu0 0.0
        %1185 = vmatprep.subr.mxu0 0.0
        %1186 = vmatpush1.msra.mxu0 0.0
        %1187 = vmatprep.subr.mxu0 0.0
        %1188 = vmatpush1.msra.mxu0 0.0
        %1189 = vmatprep.subr.mxu0 0.0
        %1190 = vmatpush1.msra.mxu0 0.0
        %1191 = vmatprep.subr.mxu0 0.0
        %1192 = vmatpush1.msra.mxu0 0.0
        %1193 = vmatprep.subr.mxu0 0.0
        %1194 = vmatpush1.msra.mxu0 0.0
        %1195 = vmatprep.subr.mxu0 0.0
        %1196 = vmatpush1.msra.mxu0 0.0
        %1197 = vmatprep.subr.mxu0 0.0
        %1198 = vmatpush1.msra.mxu0 0.0
        %1199 = vmatprep.subr.mxu0 0.0
        %1200 = vmatpush1.msra.mxu0 0.0
        %1201 = vmatprep.subr.mxu0 0.0
        %1202 = vmatpush1.msra.mxu0 0.0
        %1203 = vmatprep.subr.mxu0 0.0
        %1204 = vmatpush1.msra.mxu0 0.0
        %1205 = vmatprep.subr.mxu0 0.0
        %1206 = vmatpush1.msra.mxu0 0.0
        %1207 = vmatprep.subr.mxu0 0.0
        %1208 = vmatpush1.msra.mxu0 0.0
        %1209 = vmatprep.subr.mxu0 0.0
        %1210 = vmatpush1.msra.mxu0 0.0
        %1211 = vmatprep.subr.mxu0 0.0
        %1212 = vmatpush1.msra.mxu0 0.0
        %1213 = vmatprep.subr.mxu0 0.0
        %1214 = vmatpush1.msra.mxu0 0.0
        %1215 = vmatprep.subr.mxu0 0.0
        %1216 = vmatpush1.msra.mxu0 0.0
        %1217 = vmatprep.subr.mxu0 0.0
        %1218 = vmatpush1.msra.mxu0 0.0
        %1219 = vmatprep.subr.mxu0 0.0
        %1220 = vmatpush1.msra.mxu0 0.0
        %1221 = vmatprep.subr.mxu0 0.0
        %1222 = vmatpush1.msra.mxu0 0.0
        %1223 = vmatprep.subr.mxu0 0.0
        %1224 = vmatpush1.msra.mxu0 0.0
        %1225 = vmatprep.mubr.f32.mxu0 0.0
        %1226 = vmatmul.mubr.f32.gmra.mrb[0].mxu0 %v1159
        %v1227 = vpop.f32.mrb[0].mxu0
        %v1228 = vadd.f32 0.0, %v1227
        %v1229 = vpop.f32.mrb[0].mxu0
        %1230 = vdwg.mxu0
        %v1232 = vsel %vm809, %v1155, 0
        %1234 = vmatprep.subr.mxu0 0.0
        %1235 = vmatpush1.msra.mxu0 %v806
        %1236 = vmatprep.subr.mxu0 0.0
        %1237 = vmatpush1.msra.mxu0 0.0
        %1238 = vmatprep.subr.mxu0 0.0
        %1239 = vmatpush1.msra.mxu0 0.0
        %1240 = vmatprep.subr.mxu0 0.0
        %1241 = vmatpush1.msra.mxu0 0.0
        %1242 = vmatprep.subr.mxu0 0.0
        %1243 = vmatpush1.msra.mxu0 0.0
        %1244 = vmatprep.subr.mxu0 0.0
        %1245 = vmatpush1.msra.mxu0 0.0
        %1246 = vmatprep.subr.mxu0 0.0
        %1247 = vmatpush1.msra.mxu0 0.0
        %1248 = vmatprep.subr.mxu0 0.0
        %1249 = vmatpush1.msra.mxu0 0.0
        %1250 = vmatprep.subr.mxu0 0.0
        %1251 = vmatpush1.msra.mxu0 0.0
        %1252 = vmatprep.subr.mxu0 0.0
        %1253 = vmatpush1.msra.mxu0 0.0
        %1254 = vmatprep.subr.mxu0 0.0
        %1255 = vmatpush1.msra.mxu0 0.0
        %1256 = vmatprep.subr.mxu0 0.0
        %1257 = vmatpush1.msra.mxu0 0.0
        %1258 = vmatprep.subr.mxu0 0.0
        %1259 = vmatpush1.msra.mxu0 0.0
        %1260 = vmatprep.subr.mxu0 0.0
        %1261 = vmatpush1.msra.mxu0 0.0
        %1262 = vmatprep.subr.mxu0 0.0
        %1263 = vmatpush1.msra.mxu0 0.0
        %1264 = vmatprep.subr.mxu0 0.0
        %1265 = vmatpush1.msra.mxu0 0.0
        %1266 = vmatprep.subr.mxu0 0.0
        %1267 = vmatpush1.msra.mxu0 0.0
        %1268 = vmatprep.subr.mxu0 0.0
        %1269 = vmatpush1.msra.mxu0 0.0
        %1270 = vmatprep.subr.mxu0 0.0
        %1271 = vmatpush1.msra.mxu0 0.0
        %1272 = vmatprep.subr.mxu0 0.0
        %1273 = vmatpush1.msra.mxu0 0.0
        %1274 = vmatprep.subr.mxu0 0.0
        %1275 = vmatpush1.msra.mxu0 0.0
        %1276 = vmatprep.subr.mxu0 0.0
        %1277 = vmatpush1.msra.mxu0 0.0
        %1278 = vmatprep.subr.mxu0 0.0
        %1279 = vmatpush1.msra.mxu0 0.0
        %1280 = vmatprep.subr.mxu0 0.0
        %1281 = vmatpush1.msra.mxu0 0.0
        %1282 = vmatprep.subr.mxu0 0.0
        %1283 = vmatpush1.msra.mxu0 0.0
        %1284 = vmatprep.subr.mxu0 0.0
        %1285 = vmatpush1.msra.mxu0 0.0
        %1286 = vmatprep.subr.mxu0 0.0
        %1287 = vmatpush1.msra.mxu0 0.0
        %1288 = vmatprep.subr.mxu0 0.0
        %1289 = vmatpush1.msra.mxu0 0.0
        %1290 = vmatprep.subr.mxu0 0.0
        %1291 = vmatpush1.msra.mxu0 0.0
        %1292 = vmatprep.subr.mxu0 0.0
        %1293 = vmatpush1.msra.mxu0 0.0
        %1294 = vmatprep.subr.mxu0 0.0
        %1295 = vmatpush1.msra.mxu0 0.0
        %1296 = vmatprep.subr.mxu0 0.0
        %1297 = vmatpush1.msra.mxu0 0.0
        %1298 = vmatprep.mubr.f32.mxu0 0.0
        %1299 = vmatmul.mubr.f32.gmra.mrb[0].mxu0 %v1232
        %v1300 = vpop.f32.mrb[0].mxu0
        %v1301 = vadd.f32 0.0, %v1300
        %v1302 = vpop.f32.mrb[0].mxu0
        %1303 = vdwg.mxu0
        %v1305 = vsel %vm809, %v1156, 0
        %1307 = vmatprep.subr.mxu0 0.0
        %1308 = vmatpush1.msra.mxu0 %v807
        %1309 = vmatprep.subr.mxu0 0.0
        %1310 = vmatpush1.msra.mxu0 0.0
        %1311 = vmatprep.subr.mxu0 0.0
        %1312 = vmatpush1.msra.mxu0 0.0
        %1313 = vmatprep.subr.mxu0 0.0
        %1314 = vmatpush1.msra.mxu0 0.0
        %1315 = vmatprep.subr.mxu0 0.0
        %1316 = vmatpush1.msra.mxu0 0.0
        %1317 = vmatprep.subr.mxu0 0.0
        %1318 = vmatpush1.msra.mxu0 0.0
        %1319 = vmatprep.subr.mxu0 0.0
        %1320 = vmatpush1.msra.mxu0 0.0
        %1321 = vmatprep.subr.mxu0 0.0
        %1322 = vmatpush1.msra.mxu0 0.0
        %1323 = vmatprep.subr.mxu0 0.0
        %1324 = vmatpush1.msra.mxu0 0.0
        %1325 = vmatprep.subr.mxu0 0.0
        %1326 = vmatpush1.msra.mxu0 0.0
        %1327 = vmatprep.subr.mxu0 0.0
        %1328 = vmatpush1.msra.mxu0 0.0
        %1329 = vmatprep.subr.mxu0 0.0
        %1330 = vmatpush1.msra.mxu0 0.0
        %1331 = vmatprep.subr.mxu0 0.0
        %1332 = vmatpush1.msra.mxu0 0.0
        %1333 = vmatprep.subr.mxu0 0.0
        %1334 = vmatpush1.msra.mxu0 0.0
        %1335 = vmatprep.subr.mxu0 0.0
        %1336 = vmatpush1.msra.mxu0 0.0
        %1337 = vmatprep.subr.mxu0 0.0
        %1338 = vmatpush1.msra.mxu0 0.0
        %1339 = vmatprep.subr.mxu0 0.0
        %1340 = vmatpush1.msra.mxu0 0.0
        %1341 = vmatprep.subr.mxu0 0.0
        %1342 = vmatpush1.msra.mxu0 0.0
        %1343 = vmatprep.subr.mxu0 0.0
        %1344 = vmatpush1.msra.mxu0 0.0
        %1345 = vmatprep.subr.mxu0 0.0
        %1346 = vmatpush1.msra.mxu0 0.0
        %1347 = vmatprep.subr.mxu0 0.0
        %1348 = vmatpush1.msra.mxu0 0.0
        %1349 = vmatprep.subr.mxu0 0.0
        %1350 = vmatpush1.msra.mxu0 0.0
        %1351 = vmatprep.subr.mxu0 0.0
        %1352 = vmatpush1.msra.mxu0 0.0
        %1353 = vmatprep.subr.mxu0 0.0
        %1354 = vmatpush1.msra.mxu0 0.0
        %1355 = vmatprep.subr.mxu0 0.0
        %1356 = vmatpush1.msra.mxu0 0.0
        %1357 = vmatprep.subr.mxu0 0.0
        %1358 = vmatpush1.msra.mxu0 0.0
        %1359 = vmatprep.subr.mxu0 0.0
        %1360 = vmatpush1.msra.mxu0 0.0
        %1361 = vmatprep.subr.mxu0 0.0
        %1362 = vmatpush1.msra.mxu0 0.0
        %1363 = vmatprep.subr.mxu0 0.0
        %1364 = vmatpush1.msra.mxu0 0.0
        %1365 = vmatprep.subr.mxu0 0.0
        %1366 = vmatpush1.msra.mxu0 0.0
        %1367 = vmatprep.subr.mxu0 0.0
        %1368 = vmatpush1.msra.mxu0 0.0
        %1369 = vmatprep.subr.mxu0 0.0
        %1370 = vmatpush1.msra.mxu0 0.0
        %1371 = vmatprep.mubr.f32.mxu0 0.0
        %1372 = vmatmul.mubr.f32.gmra.mrb[0].mxu0 %v1305
        %v1373 = vpop.f32.mrb[0].mxu0
        %v1374 = vadd.f32 0.0, %v1373
        %v1375 = vpop.f32.mrb[0].mxu0
        %1376 = vdwg.mxu0
        %v1378 = vsel %vm809, %v1157, 0
        %1380 = vmatprep.subr.mxu0 0.0
        %1381 = vmatpush1.msra.mxu0 %v808
        %1382 = vmatprep.subr.mxu0 0.0
        %1383 = vmatpush1.msra.mxu0 0.0
        %1384 = vmatprep.subr.mxu0 0.0
        %1385 = vmatpush1.msra.mxu0 0.0
        %1386 = vmatprep.subr.mxu0 0.0
        %1387 = vmatpush1.msra.mxu0 0.0
        %1388 = vmatprep.subr.mxu0 0.0
        %1389 = vmatpush1.msra.mxu0 0.0
        %1390 = vmatprep.subr.mxu0 0.0
        %1391 = vmatpush1.msra.mxu0 0.0
        %1392 = vmatprep.subr.mxu0 0.0
        %1393 = vmatpush1.msra.mxu0 0.0
        %1394 = vmatprep.subr.mxu0 0.0
        %1395 = vmatpush1.msra.mxu0 0.0
        %1396 = vmatprep.subr.mxu0 0.0
        %1397 = vmatpush1.msra.mxu0 0.0
        %1398 = vmatprep.subr.mxu0 0.0
        %1399 = vmatpush1.msra.mxu0 0.0
        %1400 = vmatprep.subr.mxu0 0.0
        %1401 = vmatpush1.msra.mxu0 0.0
        %1402 = vmatprep.subr.mxu0 0.0
        %1403 = vmatpush1.msra.mxu0 0.0
        %1404 = vmatprep.subr.mxu0 0.0
        %1405 = vmatpush1.msra.mxu0 0.0
        %1406 = vmatprep.subr.mxu0 0.0
        %1407 = vmatpush1.msra.mxu0 0.0
        %1408 = vmatprep.subr.mxu0 0.0
        %1409 = vmatpush1.msra.mxu0 0.0
        %1410 = vmatprep.subr.mxu0 0.0
        %1411 = vmatpush1.msra.mxu0 0.0
        %1412 = vmatprep.subr.mxu0 0.0
        %1413 = vmatpush1.msra.mxu0 0.0
        %1414 = vmatprep.subr.mxu0 0.0
        %1415 = vmatpush1.msra.mxu0 0.0
        %1416 = vmatprep.subr.mxu0 0.0
        %1417 = vmatpush1.msra.mxu0 0.0
        %1418 = vmatprep.subr.mxu0 0.0
        %1419 = vmatpush1.msra.mxu0 0.0
        %1420 = vmatprep.subr.mxu0 0.0
        %1421 = vmatpush1.msra.mxu0 0.0
        %1422 = vmatprep.subr.mxu0 0.0
        %1423 = vmatpush1.msra.mxu0 0.0
        %1424 = vmatprep.subr.mxu0 0.0
        %1425 = vmatpush1.msra.mxu0 0.0
        %1426 = vmatprep.subr.mxu0 0.0
        %1427 = vmatpush1.msra.mxu0 0.0
        %1428 = vmatprep.subr.mxu0 0.0
        %1429 = vmatpush1.msra.mxu0 0.0
        %1430 = vmatprep.subr.mxu0 0.0
        %1431 = vmatpush1.msra.mxu0 0.0
        %1432 = vmatprep.subr.mxu0 0.0
        %1433 = vmatpush1.msra.mxu0 0.0
        %1434 = vmatprep.subr.mxu0 0.0
        %1435 = vmatpush1.msra.mxu0 0.0
        %1436 = vmatprep.subr.mxu0 0.0
        %1437 = vmatpush1.msra.mxu0 0.0
        %1438 = vmatprep.subr.mxu0 0.0
        %1439 = vmatpush1.msra.mxu0 0.0
        %1440 = vmatprep.subr.mxu0 0.0
        %1441 = vmatpush1.msra.mxu0 0.0
        %1442 = vmatprep.subr.mxu0 0.0
        %1443 = vmatpush1.msra.mxu0 0.0
        %1444 = vmatprep.mubr.f32.mxu0 0.0
        %1445 = vmatmul.mubr.f32.gmra.mrb[0].mxu0 %v1378
        %v1446 = vpop.f32.mrb[0].mxu0
        %v1447 = vadd.f32 0.0, %v1446
        %v1448 = vpop.f32.mrb[0].mxu0
        %1449 = vdwg.mxu0
        %v1450 = vcombine.low %v1228, %v1374
        %v1451 = vcombine.high %v1228, %v1374
        %v1453 = vunpack.c.l.s4 1983009808
        %v1454 = vunpack.c.0.s8 %v1453
        %v1455 = vlaneseq
        %v1456 = vshrl.u32 %v1455, 7
        %v1457 = vsub.s32 %v1454, %v1456
        %v1458 = vrot.slane %v1450, %v1457
        %v1460 = vunpack.c.l.s4 1983009808
        %v1461 = vunpack.c.0.s8 %v1460
        %v1462 = vlaneseq
        %v1463 = vshrl.u32 %v1462, 7
        %v1464 = vsub.s32 %v1461, %v1463
        %v1465 = vrot.slane %v1451, %v1464
        %v1466 = vcombine.low %v1301, %v1447
        %v1467 = vcombine.high %v1301, %v1447
        %v1469 = vunpack.c.l.s4 1983009808
        %v1470 = vunpack.c.0.s8 %v1469
        %v1471 = vlaneseq
        %v1472 = vshrl.u32 %v1471, 7
        %v1473 = vsub.s32 %v1470, %v1472
        %v1474 = vrot.slane %v1466, %v1473
        %v1476 = vunpack.c.l.s4 1983009808
        %v1477 = vunpack.c.0.s8 %v1476
        %v1478 = vlaneseq
        %v1479 = vshrl.u32 %v1478, 7
        %v1480 = vsub.s32 %v1477, %v1479
        %v1481 = vrot.slane %v1467, %v1480
        %v1482 = vcombine.low %v1458, %v1474
        %v1483 = vcombine.high %v1458, %v1474
        %v1485 = vunpack.c.l.s4 1934713408
        %v1486 = vunpack.c.0.s8 %v1485
        %v1487 = vlaneseq
        %v1488 = vshrl.u32 %v1487, 7
        %v1489 = vsub.s32 %v1486, %v1488
        %v1490 = vrot.slane %v1482, %v1489
        %v1492 = vunpack.c.l.s4 1934713408
        %v1493 = vunpack.c.0.s8 %v1492
        %v1494 = vlaneseq
        %v1495 = vshrl.u32 %v1494, 7
        %v1496 = vsub.s32 %v1493, %v1495
        %v1497 = vrot.slane %v1483, %v1496
        %v1498 = vcombine.low %v1465, %v1481
        %v1499 = vcombine.high %v1465, %v1481
        %v1501 = vunpack.c.l.s4 1934713408
        %v1502 = vunpack.c.0.s8 %v1501
        %v1503 = vlaneseq
        %v1504 = vshrl.u32 %v1503, 7
        %v1505 = vsub.s32 %v1502, %v1504
        %v1506 = vrot.slane %v1498, %v1505
        %v1508 = vunpack.c.l.s4 1934713408
        %v1509 = vunpack.c.0.s8 %v1508
        %v1510 = vlaneseq
        %v1511 = vshrl.u32 %v1510, 7
        %v1512 = vsub.s32 %v1509, %v1511
        %v1513 = vrot.slane %v1499, %v1512
        %v1514 = vcombine.high %v1490, 0.0
        %v1515 = vcombine.high %v1497, 0.0
        %v1516 = vcombine.high %v1506, 0.0
        %v1517 = vcombine.high %v1513, 0.0
        %v1518 = vcombine.low %v1490, %v1497
        %v1520 = vunpack.c.l.s4 1983009808
        %v1521 = vunpack.c.0.s8 %v1520
        %v1522 = vlaneseq
        %v1523 = vshrl.u32 %v1522, 7
        %v1524 = vsub.s32 %v1521, %v1523
        %v1525 = vrot.slane %v1518, %v1524
        %v1526 = vcombine.low %v1514, %v1515
        %v1528 = vunpack.c.l.s4 1983009808
        %v1529 = vunpack.c.0.s8 %v1528
        %v1530 = vlaneseq
        %v1531 = vshrl.u32 %v1530, 7
        %v1532 = vsub.s32 %v1529, %v1531
        %v1533 = vrot.slane %v1526, %v1532
        %v1534 = vcombine.low %v1506, %v1513
        %v1536 = vunpack.c.l.s4 1983009808
        %v1537 = vunpack.c.0.s8 %v1536
        %v1538 = vlaneseq
        %v1539 = vshrl.u32 %v1538, 7
        %v1540 = vsub.s32 %v1537, %v1539
        %v1541 = vrot.slane %v1534, %v1540
        %v1542 = vcombine.low %v1516, %v1517
        %v1544 = vunpack.c.l.s4 1983009808
        %v1545 = vunpack.c.0.s8 %v1544
        %v1546 = vlaneseq
        %v1547 = vshrl.u32 %v1546, 7
        %v1548 = vsub.s32 %v1545, %v1547
        %v1549 = vrot.slane %v1542, %v1548
        %v1550 = vcombine.low %v1525, %v1533
        %v1551 = vcombine.high %v1525, %v1533
        %v1553 = vunpack.c.l.s4 1934713408
        %v1554 = vunpack.c.0.s8 %v1553
        %v1555 = vlaneseq
        %v1556 = vshrl.u32 %v1555, 7
        %v1557 = vsub.s32 %v1554, %v1556
        %v1558 = vrot.slane %v1550, %v1557
        %v1560 = vunpack.c.l.s4 1934713408
        %v1561 = vunpack.c.0.s8 %v1560
        %v1562 = vlaneseq
        %v1563 = vshrl.u32 %v1562, 7
        %v1564 = vsub.s32 %v1561, %v1563
        %v1565 = vrot.slane %v1551, %v1564
        %v1566 = vcombine.low %v1541, %v1549
        %v1567 = vcombine.high %v1541, %v1549
        %v1569 = vunpack.c.l.s4 1934713408
        %v1570 = vunpack.c.0.s8 %v1569
        %v1571 = vlaneseq
        %v1572 = vshrl.u32 %v1571, 7
        %v1573 = vsub.s32 %v1570, %v1572
        %v1574 = vrot.slane %v1566, %v1573
        %v1576 = vunpack.c.l.s4 1934713408
        %v1577 = vunpack.c.0.s8 %v1576
        %v1578 = vlaneseq
        %v1579 = vshrl.u32 %v1578, 7
        %v1580 = vsub.s32 %v1577, %v1579
        %v1581 = vrot.slane %v1567, %v1580
        %v1582 = vcombine.low %v1558, %v1574
        %v1583 = vcombine.high %v1558, %v1574
        %v1584 = vcombine.low %v1565, %v1581
        %v1585 = vcombine.high %v1565, %v1581
        %1587 = vrot.lane.b32.xlu0 %v1583, 8
        %v1588 = vpop.permute.xlu0 %1587
        %1591 = vrot.lane.b32.xlu0 %v1584, 16
        %v1592 = vpop.permute.xlu0 %1591
        %1595 = vrot.lane.b32.xlu0 %v1585, 24
        %v1596 = vpop.permute.xlu0 %1595
        %v1598 = vsel %vm809, %v1582, %v1588
        %vm1599 = vcmask 130048
        %v1600 = vsel %vm1599, %v1598, %v1592
        %vm1601 = vcmask 195584
        %v1602 = vsel %vm1601, %v1600, %v1596
        %v1603 = vld [vmem:[%s3] sm:$0xff]
        %v1604 = vld [vmem:[%s3 + $0x8] sm:$0xff]
        %v1605 = vld [vmem:[%s3 + $0x10] sm:$0xff]
        %v1606 = vld [vmem:[%s3 + $0x18] sm:$0xff]
        %v1607 = vlaneseq
        %v1608 = vshrl.u32 %v1607, 7
        %v1609 = vsub.s32 0, %v1608
        %v1610 = vrot.slane %v280, %v1609
        %v1612 = vsel %vm293, %v1602, 0
        %1614 = vmatprep.subr.mxu0 0.0
        %1615 = vmatpush1.msra.mxu0 %v1603
        %1616 = vmatprep.subr.mxu0 0.0
        %1617 = vmatpush1.msra.mxu0 %v1604
        %1618 = vmatprep.subr.mxu0 0.0
        %1619 = vmatpush1.msra.mxu0 %v1605
        %1620 = vmatprep.subr.mxu0 0.0
        %1621 = vmatpush1.msra.mxu0 %v1606
        %1622 = vmatprep.subr.mxu0 0.0
        %1623 = vmatpush1.msra.mxu0 0.0
        %1624 = vmatprep.subr.mxu0 0.0
        %1625 = vmatpush1.msra.mxu0 0.0
        %1626 = vmatprep.subr.mxu0 0.0
        %1627 = vmatpush1.msra.mxu0 0.0
        %1628 = vmatprep.subr.mxu0 0.0
        %1629 = vmatpush1.msra.mxu0 0.0
        %1630 = vmatprep.subr.mxu0 0.0
        %1631 = vmatpush1.msra.mxu0 0.0
        %1632 = vmatprep.subr.mxu0 0.0
        %1633 = vmatpush1.msra.mxu0 0.0
        %1634 = vmatprep.subr.mxu0 0.0
        %1635 = vmatpush1.msra.mxu0 0.0
        %1636 = vmatprep.subr.mxu0 0.0
        %1637 = vmatpush1.msra.mxu0 0.0
        %1638 = vmatprep.subr.mxu0 0.0
        %1639 = vmatpush1.msra.mxu0 0.0
        %1640 = vmatprep.subr.mxu0 0.0
        %1641 = vmatpush1.msra.mxu0 0.0
        %1642 = vmatprep.subr.mxu0 0.0
        %1643 = vmatpush1.msra.mxu0 0.0
        %1644 = vmatprep.subr.mxu0 0.0
        %1645 = vmatpush1.msra.mxu0 0.0
        %1646 = vmatprep.subr.mxu0 0.0
        %1647 = vmatpush1.msra.mxu0 0.0
        %1648 = vmatprep.subr.mxu0 0.0
        %1649 = vmatpush1.msra.mxu0 0.0
        %1650 = vmatprep.subr.mxu0 0.0
        %1651 = vmatpush1.msra.mxu0 0.0
        %1652 = vmatprep.subr.mxu0 0.0
        %1653 = vmatpush1.msra.mxu0 0.0
        %1654 = vmatprep.subr.mxu0 0.0
        %1655 = vmatpush1.msra.mxu0 0.0
        %1656 = vmatprep.subr.mxu0 0.0
        %1657 = vmatpush1.msra.mxu0 0.0
        %1658 = vmatprep.subr.mxu0 0.0
        %1659 = vmatpush1.msra.mxu0 0.0
        %1660 = vmatprep.subr.mxu0 0.0
        %1661 = vmatpush1.msra.mxu0 0.0
        %1662 = vmatprep.subr.mxu0 0.0
        %1663 = vmatpush1.msra.mxu0 0.0
        %1664 = vmatprep.subr.mxu0 0.0
        %1665 = vmatpush1.msra.mxu0 0.0
        %1666 = vmatprep.subr.mxu0 0.0
        %1667 = vmatpush1.msra.mxu0 0.0
        %1668 = vmatprep.subr.mxu0 0.0
        %1669 = vmatpush1.msra.mxu0 0.0
        %1670 = vmatprep.subr.mxu0 0.0
        %1671 = vmatpush1.msra.mxu0 0.0
        %1672 = vmatprep.subr.mxu0 0.0
        %1673 = vmatpush1.msra.mxu0 0.0
        %1674 = vmatprep.subr.mxu0 0.0
        %1675 = vmatpush1.msra.mxu0 0.0
        %1676 = vmatprep.subr.mxu0 0.0
        %1677 = vmatpush1.msra.mxu0 0.0
        %1678 = vmatprep.mubr.f32.mxu0 0.0
        %1679 = vmatmul.mubr.f32.gmra.mrb[0].mxu0 %v1612
        %v1680 = vpop.f32.mrb[0].mxu0
        %v1681 = vadd.f32 %v1610, %v1680
        %v1682 = vpop.f32.mrb[0].mxu0
        %1683 = vdwg.mxu0
        %v1684 = vadd.f32 %v284, %v1681
        %v1685 = vsel %vm293, %v1684, 0.0
        %1686 = vadd.xlane.f32.xlu0 %v1685
        %v1687 = vpop.xlane.xlu0 %1686
        %v1688 = vrot.slane %v1687, 4
        %v1689 = vadd.f32 %v1687, %v1688
        %v1690 = vrot.slane %v1689, 2
        %v1691 = vadd.f32 %v1689, %v1690
        %v1692 = vrot.slane %v1691, 1
        %v1693 = vadd.f32 %v1691, %v1692
        %v1694 = vmul.f32 %v1693, 0.00390625
        %v1695 = vmul.f32 %v1684, %v1684
        %v1696 = vsel %vm293, %v1695, 0.0
        %1697 = vadd.xlane.f32.xlu0 %v1696
        %v1698 = vpop.xlane.xlu0 %1697
        %v1699 = vrot.slane %v1698, 4
        %v1700 = vadd.f32 %v1698, %v1699
        %v1701 = vrot.slane %v1700, 2
        %v1702 = vadd.f32 %v1700, %v1701
        %v1703 = vrot.slane %v1702, 1
        %v1704 = vadd.f32 %v1702, %v1703
        %v1705 = vmul.f32 %v1704, 0.00390625
        %v1706 = vmul.f32 %v1694, %v1694
        %v1707 = vsub.f32 %v1705, %v1706
        %v1708 = vmax.f32 %v1707, 0.0
        %v1709 = vsub.f32 %v1684, %v1694
        %v1710 = vadd.f32 %v1708, 1e-05
        %v1711 = vrsqrt.pop %v1710
        %v1712 = vmul.f32 %v1709, %v1711
        %v1713 = vmul.f32 %v1712, %v276
        %v1714 = vadd.f32 %v1713, %v278
        %v1715 = vld [vmem:[%s4] sm:$0xff]
        %v1716 = vld [vmem:[%s4 + $0x8] sm:$0xff]
        %v1717 = vld [vmem:[%s4 + $0x10] sm:$0xff]
        %v1718 = vld [vmem:[%s4 + $0x18] sm:$0xff]
        %v1719 = vlaneseq
        %v1720 = vshrl.u32 %v1719, 7
        %v1721 = vsub.s32 0, %v1720
        %v1722 = vrot.slane %v281, %v1721
        %v1724 = vsel %vm293, %v1714, 0
        %1726 = vmatprep.subr.mxu0 0.0
        %1727 = vmatpush1.msra.mxu0 %v1715
        %1728 = vmatprep.subr.mxu0 0.0
        %1729 = vmatpush1.msra.mxu0 %v1716
        %1730 = vmatprep.subr.mxu0 0.0
        %1731 = vmatpush1.msra.mxu0 %v1717
        %1732 = vmatprep.subr.mxu0 0.0
        %1733 = vmatpush1.msra.mxu0 %v1718
        %1734 = vmatprep.subr.mxu0 0.0
        %1735 = vmatpush1.msra.mxu0 0.0
        %1736 = vmatprep.subr.mxu0 0.0
        %1737 = vmatpush1.msra.mxu0 0.0
        %1738 = vmatprep.subr.mxu0 0.0
        %1739 = vmatpush1.msra.mxu0 0.0
        %1740 = vmatprep.subr.mxu0 0.0
        %1741 = vmatpush1.msra.mxu0 0.0
        %1742 = vmatprep.subr.mxu0 0.0
        %1743 = vmatpush1.msra.mxu0 0.0
        %1744 = vmatprep.subr.mxu0 0.0
        %1745 = vmatpush1.msra.mxu0 0.0
        %1746 = vmatprep.subr.mxu0 0.0
        %1747 = vmatpush1.msra.mxu0 0.0
        %1748 = vmatprep.subr.mxu0 0.0
        %1749 = vmatpush1.msra.mxu0 0.0
        %1750 = vmatprep.subr.mxu0 0.0
        %1751 = vmatpush1.msra.mxu0 0.0
        %1752 = vmatprep.subr.mxu0 0.0
        %1753 = vmatpush1.msra.mxu0 0.0
        %1754 = vmatprep.subr.mxu0 0.0
        %1755 = vmatpush1.msra.mxu0 0.0
        %1756 = vmatprep.subr.mxu0 0.0
        %1757 = vmatpush1.msra.mxu0 0.0
        %1758 = vmatprep.subr.mxu0 0.0
        %1759 = vmatpush1.msra.mxu0 0.0
        %1760 = vmatprep.subr.mxu0 0.0
        %1761 = vmatpush1.msra.mxu0 0.0
        %1762 = vmatprep.subr.mxu0 0.0
        %1763 = vmatpush1.msra.mxu0 0.0
        %1764 = vmatprep.subr.mxu0 0.0
        %1765 = vmatpush1.msra.mxu0 0.0
        %1766 = vmatprep.subr.mxu0 0.0
        %1767 = vmatpush1.msra.mxu0 0.0
        %1768 = vmatprep.subr.mxu0 0.0
        %1769 = vmatpush1.msra.mxu0 0.0
        %1770 = vmatprep.subr.mxu0 0.0
        %1771 = vmatpush1.msra.mxu0 0.0
        %1772 = vmatprep.subr.mxu0 0.0
        %1773 = vmatpush1.msra.mxu0 0.0
        %1774 = vmatprep.subr.mxu0 0.0
        %1775 = vmatpush1.msra.mxu0 0.0
        %1776 = vmatprep.subr.mxu0 0.0
        %1777 = vmatpush1.msra.mxu0 0.0
        %1778 = vmatprep.subr.mxu0 0.0
        %1779 = vmatpush1.msra.mxu0 0.0
        %1780 = vmatprep.subr.mxu0 0.0
        %1781 = vmatpush1.msra.mxu0 0.0
        %1782 = vmatprep.subr.mxu0 0.0
        %1783 = vmatpush1.msra.mxu0 0.0
        %1784 = vmatprep.subr.mxu0 0.0
        %1785 = vmatpush1.msra.mxu0 0.0
        %1786 = vmatprep.subr.mxu0 0.0
        %1787 = vmatpush1.msra.mxu0 0.0
        %1788 = vmatprep.subr.mxu0 0.0
        %1789 = vmatpush1.msra.mxu0 0.0
        %1790 = vmatprep.mubr.f32.mxu0 0.0
        %1791 = vmatmul.mubr.f32.gmra.mrb[0].mxu0 %v1724
        %v1792 = vpop.f32.mrb[0].mxu0
        %v1793 = vadd.f32 %v1722, %v1792
        %v1794 = vpop.f32.mrb[0].mxu0
        %1795 = vdwg.mxu0
        %vm1796 = vcmp.gt.f32.partialorder %v1793, 0.0
        %v1797 = vmul.f32 %v1793, 0.01
        %v1798 = vsel %vm1796, %v1793, %v1797
        %v1799 = vld [vmem:[%s5] sm:$0xff]
        %v1800 = vld [vmem:[%s5 + $0x8] sm:$0xff]
        %v1801 = vld [vmem:[%s5 + $0x10] sm:$0xff]
        %v1802 = vld [vmem:[%s5 + $0x18] sm:$0xff]
        %v1803 = vld [vmem:[%s5 + $0x20] sm:$0xff]
        %v1804 = vld [vmem:[%s5 + $0x28] sm:$0xff]
        %v1805 = vld [vmem:[%s5 + $0x30] sm:$0xff]
        %v1806 = vld [vmem:[%s5 + $0x38] sm:$0xff]
        %v1807 = vld [vmem:[%s5 + $0x40] sm:$0xff]
        %v1808 = vld [vmem:[%s5 + $0x48] sm:$0xff]
        %v1809 = vld [vmem:[%s5 + $0x50] sm:$0xff]
        %v1810 = vld [vmem:[%s5 + $0x58] sm:$0xff]
        %v1811 = vld [vmem:[%s5 + $0x60] sm:$0xff]
        %v1812 = vld [vmem:[%s5 + $0x68] sm:$0xff]
        %v1813 = vld [vmem:[%s5 + $0x70] sm:$0xff]
        %v1814 = vld [vmem:[%s5 + $0x78] sm:$0xff]
        %v1815 = vlaneseq
        %v1816 = vshrl.u32 %v1815, 7
        %v1817 = vsub.s32 0, %v1816
        %v1818 = vrot.slane %v282, %v1817
        %1819 = vmatprep.subr.mxu0 0.0
        %1820 = vmatpush1.msra.mxu0 %v1799
        %1821 = vmatprep.subr.mxu0 0.0
        %1822 = vmatpush1.msra.mxu0 %v1800
        %1823 = vmatprep.subr.mxu0 0.0
        %1824 = vmatpush1.msra.mxu0 %v1801
        %1825 = vmatprep.subr.mxu0 0.0
        %1826 = vmatpush1.msra.mxu0 %v1802
        %1827 = vmatprep.subr.mxu0 0.0
        %1828 = vmatpush1.msra.mxu0 %v1803
        %1829 = vmatprep.subr.mxu0 0.0
        %1830 = vmatpush1.msra.mxu0 %v1804
        %1831 = vmatprep.subr.mxu0 0.0
        %1832 = vmatpush1.msra.mxu0 %v1805
        %1833 = vmatprep.subr.mxu0 0.0
        %1834 = vmatpush1.msra.mxu0 %v1806
        %1835 = vmatprep.subr.mxu0 0.0
        %1836 = vmatpush1.msra.mxu0 %v1807
        %1837 = vmatprep.subr.mxu0 0.0
        %1838 = vmatpush1.msra.mxu0 %v1808
        %1839 = vmatprep.subr.mxu0 0.0
        %1840 = vmatpush1.msra.mxu0 %v1809
        %1841 = vmatprep.subr.mxu0 0.0
        %1842 = vmatpush1.msra.mxu0 %v1810
        %1843 = vmatprep.subr.mxu0 0.0
        %1844 = vmatpush1.msra.mxu0 %v1811
        %1845 = vmatprep.subr.mxu0 0.0
        %1846 = vmatpush1.msra.mxu0 %v1812
        %1847 = vmatprep.subr.mxu0 0.0
        %1848 = vmatpush1.msra.mxu0 %v1813
        %1849 = vmatprep.subr.mxu0 0.0
        %1850 = vmatpush1.msra.mxu0 %v1814
        %1851 = vmatprep.subr.mxu0 0.0
        %1852 = vmatpush1.msra.mxu0 0.0
        %1853 = vmatprep.subr.mxu0 0.0
        %1854 = vmatpush1.msra.mxu0 0.0
        %1855 = vmatprep.subr.mxu0 0.0
        %1856 = vmatpush1.msra.mxu0 0.0
        %1857 = vmatprep.subr.mxu0 0.0
        %1858 = vmatpush1.msra.mxu0 0.0
        %1859 = vmatprep.subr.mxu0 0.0
        %1860 = vmatpush1.msra.mxu0 0.0
        %1861 = vmatprep.subr.mxu0 0.0
        %1862 = vmatpush1.msra.mxu0 0.0
        %1863 = vmatprep.subr.mxu0 0.0
        %1864 = vmatpush1.msra.mxu0 0.0
        %1865 = vmatprep.subr.mxu0 0.0
        %1866 = vmatpush1.msra.mxu0 0.0
        %1867 = vmatprep.subr.mxu0 0.0
        %1868 = vmatpush1.msra.mxu0 0.0
        %1869 = vmatprep.subr.mxu0 0.0
        %1870 = vmatpush1.msra.mxu0 0.0
        %1871 = vmatprep.subr.mxu0 0.0
        %1872 = vmatpush1.msra.mxu0 0.0
        %1873 = vmatprep.subr.mxu0 0.0
        %1874 = vmatpush1.msra.mxu0 0.0
        %1875 = vmatprep.subr.mxu0 0.0
        %1876 = vmatpush1.msra.mxu0 0.0
        %1877 = vmatprep.subr.mxu0 0.0
        %1878 = vmatpush1.msra.mxu0 0.0
        %1879 = vmatprep.subr.mxu0 0.0
        %1880 = vmatpush1.msra.mxu0 0.0
        %1881 = vmatprep.subr.mxu0 0.0
        %1882 = vmatpush1.msra.mxu0 0.0
        %1883 = vmatprep.mubr.f32.mxu0 0.0
        %1884 = vmatmul.mubr.f32.gmra.mrb[0].mxu0 %v1798
        %v1885 = vpop.f32.mrb[0].mxu0
        %v1886 = vadd.f32 %v1818, %v1885
        %v1887 = vpop.f32.mrb[0].mxu0
        %1888 = vdwg.mxu0
        %v1889 = vadd.f32 %v1714, %v1886
        %v1890 = vsel %vm293, %v1889, 0.0
        %1891 = vadd.xlane.f32.xlu0 %v1890
        %v1892 = vpop.xlane.xlu0 %1891
        %v1893 = vrot.slane %v1892, 4
        %v1894 = vadd.f32 %v1892, %v1893
        %v1895 = vrot.slane %v1894, 2
        %v1896 = vadd.f32 %v1894, %v1895
        %v1897 = vrot.slane %v1896, 1
        %v1898 = vadd.f32 %v1896, %v1897
        %v1899 = vmul.f32 %v1898, 0.00390625
        %v1900 = vmul.f32 %v1889, %v1889
        %v1901 = vsel %vm293, %v1900, 0.0
        %1902 = vadd.xlane.f32.xlu0 %v1901
        %v1903 = vpop.xlane.xlu0 %1902
        %v1904 = vrot.slane %v1903, 4
        %v1905 = vadd.f32 %v1903, %v1904
        %v1906 = vrot.slane %v1905, 2
        %v1907 = vadd.f32 %v1905, %v1906
        %v1908 = vrot.slane %v1907, 1
        %v1909 = vadd.f32 %v1907, %v1908
        %v1910 = vmul.f32 %v1909, 0.00390625
        %v1911 = vmul.f32 %v1899, %v1899
        %v1912 = vsub.f32 %v1910, %v1911
        %v1913 = vmax.f32 %v1912, 0.0
        %v1914 = vsub.f32 %v1889, %v1899
        %v1915 = vadd.f32 %v1913, 1e-05
        %v1916 = vrsqrt.pop %v1915
        %v1917 = vmul.f32 %v1914, %v1916
        %v1918 = vmul.f32 %v1917, %v276
        %v1919 = vadd.f32 %v1918, %v278
        %1920 = vst.msk [vmem:[%s269] sm:$0xff] %vm293, %v1919
        %s1921 = sand.u32 %s181, 1
        %s1922 = scalar_lea.sflag [#allocation3], %s1921
        %s1923 = sand.u32 %s181, 1
        %s1924 = smul.addr %s1923, 8
        %s1925 = scalar_lea.vmem [#allocation2], %s1924
        // Predicated region
        $region49: #{tpu_custom_call.1} parent=47 // pred_check
          %p1926 = pneg %p191
        $region50: #{tpu_custom_call.1} parent=47 // pred_check_branch
          %1928 = sbr.rel (%p1926) target = $region52
        $region51: #{tpu_custom_call.1} parent=47 // pred_region
          %s1930 = ssub.s32 128, 128
          %1931 = vsyncadd %s1922, %s1930
          %s1932 = smul.addr %s21, 128
          %s1933 = scalar_lea.hbm %s7, %s1932
          %s1935 = sshll.u32 %s1925, 4
          %s1936 = int_to_ptr.vmem [resolvable:$true] %s1935
          %1938 = dma.vmem_to_hbm [thread:$0]  %s1936, 128, %s1933, %s1922
        $region52: #{tpu_custom_call.1} parent=47 // pred_fallthru
          _
      $region48: #{tpu_custom_call.1} parent=5 // pred_fallthru
        _
      %p1939 = scmp.le.s32.totalorder 2, %s16
      // Predicated region
      $region53: #{tpu_custom_call.1} parent=5 // pred_check
        %p1940 = pneg %p1939
      $region54: #{tpu_custom_call.1} parent=5 // pred_check_branch
        %1942 = sbr.rel (%p1940) target = $region56
      $region55: #{tpu_custom_call.1} parent=5 // pred_region
        %s1943 = ssub.s32 %s16, 2
        // Predicated region
        $region57: #{tpu_custom_call.1} parent=55 // pred_check
          %p1944 = pneg %p197
        $region58: #{tpu_custom_call.1} parent=55 // pred_check_branch
          %1946 = sbr.rel (%p1944) target = $region60
        $region59: #{tpu_custom_call.1} parent=55 // pred_region
          %s1947 = sand.u32 %s182, 1
          %s1948 = scalar_lea.sflag [#allocation3], %s1947
          %s1949 = sand.u32 %s182, 1
          %s1950 = smul.addr %s1949, 8
          %s1951 = scalar_lea.vmem [#allocation2], %s1950
          %1952 = dma.done %s1948, 128
        $region60: #{tpu_custom_call.1} parent=55 // pred_fallthru
          _
      $region56: #{tpu_custom_call.1} parent=5 // pred_fallthru
        _
    $region6: #{tpu_custom_call.1} parent=1 // loop_footer
      %s20 = sadd.s32 1, %s16
    $region7: #{tpu_custom_call.1} parent=1 // loop_footer_branch
      %15 = sbr.rel target = $region3
    $region8: #{tpu_custom_call.1} parent=1 // loop_exit
      _
    %1953 = vsyncpa [#allocation3], 1
    %s1954 = scalar_lea.sflag [#allocation3], 1
    %1955 = vsyncpa %s1954, 1

</llo_original>
